<compile_context>
chip_gen: v7x
topology: tpu7x:2x2x1
jax: 0.10.0
libtpu: 0.0.40
codegen_flags: <defaults>
</compile_context>

<pallas_src>
import functools

import jax
import jax.numpy as jnp
from jax.experimental import pallas as pl
from jax.experimental.pallas import tpu as pltpu

NEG_INF = -1e30


def _round_up(x, m):
    return ((x + m - 1) // m) * m


def _pad2(a, r, c):
    return jnp.pad(a, ((0, r - a.shape[0]), (0, c - a.shape[1])))


# ---------------------------------------------------------------------------
# Kernel
# ---------------------------------------------------------------------------
def luong_decoder_kernel(ids_ref,                        # SMEM (Bp,) int32 (scalar prefetch)
                         emb_ref,                        # VMEM (Vp, Hp) f32
                         h0_ref, enc_ref,                # VMEM (Bp,Hp) f32, (Bp,Sp,Hp) f32
                         wgx_ref, wgh_ref, bg_ref,       # VMEM (Hp,Gp) wd, (Hp,Gp) wd, (1,Gp) f32
                         wch_ref, wcc_ref, bc_ref,       # VMEM (Hp,Hp) wd, (Hp,Hp) wd, (1,Hp) f32
                         wo_ref, bo_ref,                 # VMEM (Hp,Op) wd, (1,Op) f32
                         probs_ref, hid_ref,             # outputs (Bp,Op) f32, (Bp,Hp) f32
                         *, h_valid, s_valid):
    Bp, Hp = h0_ref.shape
    Sp = enc_ref.shape[1]
    H = h_valid
    wd = wgx_ref.dtype

    h0 = h0_ref[...]                                         # (Bp, Hp) f32

    # ---- GRU h-half first: no dependence on the embedding gather ----
    gh = jnp.dot(h0.astype(wd), wgh_ref[...],
                 preferred_element_type=jnp.float32)         # (Bp, Gp)

    # ---- embedding gather: dynamic row reads from the VMEM-resident table ----
    rows = [emb_ref[pl.ds(ids_ref[b], 1), :] for b in range(Bp)]
    x = jnp.concatenate(rows, axis=0)                        # (Bp, Hp) f32
    # embedding_dropout: identity (eval mode)

    gi = jnp.dot(x.astype(wd), wgx_ref[...],
                 preferred_element_type=jnp.float32)         # (Bp, Gp)
    g = gi + gh + bg_ref[...]                                # packed gates [r|z|gi_n|gh_n], stride H

    # ---- single GRU step on the tightly-packed gate layout ----
    r = jax.nn.sigmoid(g[:, 0:H])
    z = jax.nn.sigmoid(g[:, H:2 * H])
    n = jnp.tanh(g[:, 2 * H:3 * H] + r * g[:, 3 * H:4 * H])
    h_new_v = (1.0 - z) * n + z * h0[:, 0:H]                 # (Bp, H)
    if Hp > H:
        h_new = jnp.concatenate(
            [h_new_v, jnp.zeros((Bp, Hp - H), jnp.float32)], axis=1)
    else:
        h_new = h_new_v                                      # (Bp, Hp) == rnn_output == hidden

    # ---- Luong 'dot' attention, batch-major (no in-kernel transposes) ----
    enc = enc_ref[...]                                       # (Bp, Sp, Hp) f32
    scores = jnp.sum(h_new[:, None, :] * enc, axis=-1)       # (Bp, Sp)
    if Sp != s_valid:                                        # mask padded seq positions
        sidx = jax.lax.broadcasted_iota(jnp.int32, (Bp, Sp), 1)
        scores = jnp.where(sidx < s_valid, scores, NEG_INF)
    scores = scores - jnp.max(scores, axis=1, keepdims=True)
    e = jnp.exp(scores)
    denom = jnp.sum(e, axis=1, keepdims=True)
    inv = pl.reciprocal(denom, approx=True)
    inv = inv * (2.0 - denom * inv)                          # one Newton step
    att = e * inv                                            # softmax over seq
    context = jnp.sum(att[:, :, None] * enc, axis=1)         # (Bp, Hp)

    # ---- concat Linear + tanh (split halves -> no concatenate copy) ----
    c = jnp.tanh(
        jnp.dot(h_new.astype(wd), wch_ref[...], preferred_element_type=jnp.float32)
        + jnp.dot(context.astype(wd), wcc_ref[...], preferred_element_type=jnp.float32)
        + bc_ref[...])                                       # (Bp, Hp)

    # ---- output Linear + softmax (padded logits masked via bo = -1e30) ----
    logits = jnp.dot(c.astype(wd), wo_ref[...],
                     preferred_element_type=jnp.float32) + bo_ref[...]
    logits = logits - jnp.max(logits, axis=1, keepdims=True)
    el = jnp.exp(logits)
    ld = jnp.sum(el, axis=1, keepdims=True)
    linv = pl.reciprocal(ld, approx=True)
    linv = linv * (2.0 - ld * linv)
    probs_ref[...] = el * linv
    hid_ref[...] = h_new


# ---------------------------------------------------------------------------
# One-time parameter preparation (padding + gate split/packing + bf16 cast)
# ---------------------------------------------------------------------------
def prepare_decoder_params(params, weight_dtype=jnp.bfloat16, lane=128):
    H = params["wc_t"].shape[1]
    O = params["wo_t"].shape[1]
    V = params["emb"].shape[0]
    Hp = _round_up(H, lane)
    Op = _round_up(O, lane)
    Vp = _round_up(V, 8)
    Gp = _round_up(4 * H, lane)     # tightly packed gates [r|z|gi_n|gh_n], stride H

    wih_t, whh_t = params["wih_t"], params["whh_t"]          # (H, 3H), gate order r,z,n
    bih, bhh = params["bih"], params["bhh"]                  # (1, 3H)

    # x-half: contributes to r, z, gi_n slots
    wgx = jnp.zeros((Hp, Gp), jnp.float32)
    wgx = wgx.at[:H, 0:H].set(wih_t[:, 0:H])
    wgx = wgx.at[:H, H:2 * H].set(wih_t[:, H:2 * H])
    wgx = wgx.at[:H, 2 * H:3 * H].set(wih_t[:, 2 * H:3 * H])
    # h-half: contributes to r, z, gh_n slots
    wgh = jnp.zeros((Hp, Gp), jnp.float32)
    wgh = wgh.at[:H, 0:H].set(whh_t[:, 0:H])
    wgh = wgh.at[:H, H:2 * H].set(whh_t[:, H:2 * H])
    wgh = wgh.at[:H, 3 * H:4 * H].set(whh_t[:, 2 * H:3 * H])

    bg = jnp.zeros((1, Gp), jnp.float32)
    bg = bg.at[:, 0:H].set(bih[:, 0:H] + bhh[:, 0:H])
    bg = bg.at[:, H:2 * H].set(bih[:, H:2 * H] + bhh[:, H:2 * H])
    bg = bg.at[:, 2 * H:3 * H].set(bih[:, 2 * H:3 * H])
    bg = bg.at[:, 3 * H:4 * H].set(bhh[:, 2 * H:3 * H])

    wch = _pad2(params["wc_t"][:H, :], Hp, Hp)               # rnn_output half of concat
    wcc = _pad2(params["wc_t"][H:, :], Hp, Hp)               # context half of concat
    bc = _pad2(params["bc"], 1, Hp)
    wo = _pad2(params["wo_t"], Hp, Op)
    bo = jnp.full((1, Op), NEG_INF, jnp.float32).at[:, :O].set(params["bo"])
    emb = _pad2(params["emb"], Vp, Hp)                       # stays f32 (tiny, VMEM-resident)

    wd = weight_dtype
    return dict(emb=emb,
                wgx=wgx.astype(wd), wgh=wgh.astype(wd), bg=bg,
                wch=wch.astype(wd), wcc=wcc.astype(wd), bc=bc,
                wo=wo.astype(wd), bo=bo,
                H=H, O=O, V=V, Hp=Hp, Op=Op, Vp=Vp, Gp=Gp)


# ---------------------------------------------------------------------------
# Hoisted (step-invariant) encoder-output layout plumbing
# ---------------------------------------------------------------------------
def prepare_encoder_outputs(prep, encoder_outputs):
    S, B, H = encoder_outputs.shape
    Hp = prep["Hp"]
    Bp = _round_up(B, 8)
    Sp = _round_up(S, 8)
    enc_bm = jnp.transpose(encoder_outputs, (1, 0, 2))       # batch-major (B, S, H)
    enc_p = jnp.pad(enc_bm, ((0, Bp - B), (0, Sp - S), (0, Hp - H)))
    return enc_p, S


# ---------------------------------------------------------------------------
# Forward wrapper (single decode step, same semantics as the PyTorch module)
# ---------------------------------------------------------------------------
def luong_attn_decoder_forward(prep, input_step_, last_hidden, enc_prepped, s_valid, position):
    H, O, Hp, Op, Vp, Gp = prep["H"], prep["O"], prep["Hp"], prep["Op"], prep["Vp"], prep["Gp"]
    h0 = last_hidden[0]                                       # n_layers == 1
    B = h0.shape[0]
    Bp, Sp = enc_prepped.shape[0], enc_prepped.shape[1]

    ids = jnp.zeros((Bp,), jnp.int32).at[:B].set(input_step_[position].astype(jnp.int32))
    h0_p = jnp.pad(h0, ((0, Bp - B), (0, Hp - H)))

    kernel = functools.partial(luong_decoder_kernel, h_valid=H, s_valid=s_valid)

    operands = (prep["emb"], h0_p, enc_prepped, prep["wgx"], prep["wgh"], prep["bg"],
                prep["wch"], prep["wcc"], prep["bc"], prep["wo"], prep["bo"])
    in_bytes = sum(int(a.size) * a.dtype.itemsize for a in operands)
    out_bytes = 4 * (Bp * Op + Bp * Hp)
    try:
        vmem_cap = int(pltpu.get_tpu_info().vmem_capacity_bytes)
    except Exception:
        vmem_cap = 64 * 1024 * 1024                           # conservative (v7x)
    vmem_limit = min(int(2 * (in_bytes + out_bytes) + (4 << 20)), (vmem_cap * 3) // 4)

    cost = pl.CostEstimate(
        flops=int(2 * 2 * Bp * Hp * Gp          # GRU x/h matmuls
                  + 4 * Bp * Sp * Hp            # attention scores + context
                  + 2 * 2 * Bp * Hp * Hp        # concat linear (two halves)
                  + 2 * Bp * Hp * Op            # output linear
                  + 12 * Bp * Hp),
        transcendentals=int(Bp * (3 * H + Sp + Op)),
        bytes_accessed=int(in_bytes + out_bytes),
    )

    grid_spec = pltpu.PrefetchScalarGridSpec(
        num_scalar_prefetch=1,                                # ids -> SMEM
        grid=(1,),
        in_specs=[
            pl.BlockSpec((Vp, Hp), lambda i, ids: (0, 0)),            # embedding table (VMEM)
            pl.BlockSpec((Bp, Hp), lambda i, ids: (0, 0)),            # h0
            pl.BlockSpec((Bp, Sp, Hp), lambda i, ids: (0, 0, 0)),     # encoder outputs (batch-major)
            pl.BlockSpec((Hp, Gp), lambda i, ids: (0, 0)),            # GRU weight, x half
            pl.BlockSpec((Hp, Gp), lambda i, ids: (0, 0)),            # GRU weight, h half
            pl.BlockSpec((1, Gp), lambda i, ids: (0, 0)),             # fused GRU bias
            pl.BlockSpec((Hp, Hp), lambda i, ids: (0, 0)),            # wc (rnn_output half)
            pl.BlockSpec((Hp, Hp), lambda i, ids: (0, 0)),            # wc (context half)
            pl.BlockSpec((1, Hp), lambda i, ids: (0, 0)),             # bc
            pl.BlockSpec((Hp, Op), lambda i, ids: (0, 0)),            # wo
            pl.BlockSpec((1, Op), lambda i, ids: (0, 0)),             # bo (padding = -1e30)
        ],
        out_specs=(pl.BlockSpec((Bp, Op), lambda i, ids: (0, 0)),
                   pl.BlockSpec((Bp, Hp), lambda i, ids: (0, 0))),
    )

    probs_p, hid_p = pl.pallas_call(
        kernel,
        out_shape=(jax.ShapeDtypeStruct((Bp, Op), jnp.float32),
                   jax.ShapeDtypeStruct((Bp, Hp), jnp.float32)),
        grid_spec=grid_spec,
        compiler_params=pltpu.CompilerParams(
            dimension_semantics=("arbitrary",),
            vmem_limit_bytes=vmem_limit),
        cost_estimate=cost,
    )(ids, *operands)

    return probs_p[:B, :O], hid_p[:B, :H][None, :, :]         # (B, O), (1, B, H)


def luong_attn_decoder_forward_raw(prep, input_step_, last_hidden, encoder_outputs, position):
    """Convenience wrapper matching the module interface (preps enc every call)."""
    enc_p, s_valid = prepare_encoder_outputs(prep, encoder_outputs)
    return luong_attn_decoder_forward(prep, input_step_, last_hidden, enc_p, s_valid, position)


# ---------------------------------------------------------------------------
# Pure-JAX reference (mirrors the PyTorch forward, dot attention, eval dropout)
# ---------------------------------------------------------------------------
def reference_forward(params, input_step_, last_hidden, encoder_outputs, position):
    ids = input_step_[position].reshape(1, -1)
    x = params["emb"][ids[0]]                                 # (B, H)
    h0 = last_hidden[0]
    H = h0.shape[1]
    gi = x @ params["wih_t"] + params["bih"]
    gh = h0 @ params["whh_t"] + params["bhh"]
    r = jax.nn.sigmoid(gi[:, :H] + gh[:, :H])
    z = jax.nn.sigmoid(gi[:, H:2 * H] + gh[:, H:2 * H])
    n = jnp.tanh(gi[:, 2 * H:] + r * gh[:, 2 * H:])
    h_new = (1.0 - z) * n + z * h0
    scores = jnp.sum(h_new[None] * encoder_outputs, axis=2).T  # (B, S)
    att = jax.nn.softmax(scores, axis=1)
    context = jnp.einsum('bs,sbh->bh', att, encoder_outputs)
    concat_out = jnp.tanh(jnp.concatenate([h_new, context], 1) @ params["wc_t"] + params["bc"])
    logits = concat_out @ params["wo_t"] + params["bo"]
    return jax.nn.softmax(logits, axis=1), h_new[None]


if __name__ == "__main__":
    B, H, S, V, O, MAX_LEN = 2, 32, 8, 64, 48, 10
    key = jax.random.PRNGKey(0)
    ks = jax.random.split(key, 14)
    sc = 0.1

    params = {
        "emb":   sc * jax.random.normal(ks[0], (V, H), jnp.float32),
        "wih_t": sc * jax.random.normal(ks[1], (H, 3 * H), jnp.float32),
        "whh_t": sc * jax.random.normal(ks[2], (H, 3 * H), jnp.float32),
        "bih":   sc * jax.random.normal(ks[3], (1, 3 * H), jnp.float32),
        "bhh":   sc * jax.random.normal(ks[4], (1, 3 * H), jnp.float32),
        "wc_t":  sc * jax.random.normal(ks[5], (2 * H, H), jnp.float32),
        "bc":    sc * jax.random.normal(ks[6], (1, H), jnp.float32),
        "wo_t":  sc * jax.random.normal(ks[7], (H, O), jnp.float32),
        "bo":    sc * jax.random.normal(ks[8], (1, O), jnp.float32),
    }

    input_step_ = jax.random.randint(ks[9], (MAX_LEN, B), 0, V, dtype=jnp.int32)
    last_hidden = jax.random.normal(ks[10], (1, B, H), jnp.float32)
    encoder_outputs = jax.random.normal(ks[11], (S, B, H), jnp.float32)
    position = 3

    # one-time weight fusion/padding (bf16 MXU operands) + hoisted encoder layout prep
    prep = prepare_decoder_params(params, weight_dtype=jnp.bfloat16)
    enc_prepped, s_valid = prepare_encoder_outputs(prep, encoder_outputs)

    probs, hidden = luong_attn_decoder_forward(
        prep, input_step_, last_hidden, enc_prepped, s_valid, position)
    jax.block_until_ready((probs, hidden))

    probs_ref, hidden_ref = reference_forward(
        params, input_step_, last_hidden, encoder_outputs, position)
    assert probs.shape == (B, O) and hidden.shape == (1, B, H)
    # bf16 MXU weights (f32 accumulation) -> tolerance loosened per perf review
    assert jnp.allclose(probs, probs_ref, atol=2e-2, rtol=2e-2)
    assert jnp.allclose(hidden, hidden_ref, atol=2e-2, rtol=2e-2)
    assert jnp.allclose(jnp.sum(probs, axis=1), 1.0, atol=1e-4)

    print("KERNEL_OK")
</pallas_src>

<mosaic_0001>
module attributes {stable_mosaic.version = 11 : i64} {
  func.func @luong_decoder_kernel(%arg0: i32, %arg1: memref<8xi32, #tpu.memory_space<smem>>, %arg2: memref<64x128xf32, #tpu.memory_space<vmem>>, %arg3: memref<8x128xf32, #tpu.memory_space<vmem>>, %arg4: memref<8x8x128xf32, #tpu.memory_space<vmem>>, %arg5: memref<128x128xbf16, #tpu.memory_space<vmem>>, %arg6: memref<128x128xbf16, #tpu.memory_space<vmem>>, %arg7: memref<1x128xf32, #tpu.memory_space<vmem>>, %arg8: memref<128x128xbf16, #tpu.memory_space<vmem>>, %arg9: memref<128x128xbf16, #tpu.memory_space<vmem>>, %arg10: memref<1x128xf32, #tpu.memory_space<vmem>>, %arg11: memref<128x128xbf16, #tpu.memory_space<vmem>>, %arg12: memref<1x128xf32, #tpu.memory_space<vmem>>, %arg13: memref<8x128xf32, #tpu.memory_space<vmem>>, %arg14: memref<8x128xf32, #tpu.memory_space<vmem>>) attributes {dimension_semantics = [#tpu.dimension_semantics<arbitrary>], iteration_bounds = array<i64: 1>, scalar_prefetch = 1 : i64, scratch_operands = 0 : i64, tpu.core_type = #tpu.core_type<tc>, window_params = [{pipeline_mode = #tpu.pipeline_mode<synchronous>, transform_indices = @transform_0, window_bounds = array<i64: 64, 128>}, {pipeline_mode = #tpu.pipeline_mode<synchronous>, transform_indices = @transform_1, window_bounds = array<i64: 8, 128>}, {pipeline_mode = #tpu.pipeline_mode<synchronous>, transform_indices = @transform_2, window_bounds = array<i64: 8, 8, 128>}, {pipeline_mode = #tpu.pipeline_mode<synchronous>, transform_indices = @transform_3, window_bounds = array<i64: 128, 128>}, {pipeline_mode = #tpu.pipeline_mode<synchronous>, transform_indices = @transform_4, window_bounds = array<i64: 128, 128>}, {pipeline_mode = #tpu.pipeline_mode<synchronous>, transform_indices = @transform_5, window_bounds = array<i64: 1, 128>}, {pipeline_mode = #tpu.pipeline_mode<synchronous>, transform_indices = @transform_6, window_bounds = array<i64: 128, 128>}, {pipeline_mode = #tpu.pipeline_mode<synchronous>, transform_indices = @transform_7, window_bounds = array<i64: 128, 128>}, {pipeline_mode = #tpu.pipeline_mode<synchronous>, transform_indices = @transform_8, window_bounds = array<i64: 1, 128>}, {pipeline_mode = #tpu.pipeline_mode<synchronous>, transform_indices = @transform_9, window_bounds = array<i64: 128, 128>}, {pipeline_mode = #tpu.pipeline_mode<synchronous>, transform_indices = @transform_10, window_bounds = array<i64: 1, 128>}, {pipeline_mode = #tpu.pipeline_mode<synchronous>, transform_indices = @transform_11, window_bounds = array<i64: 8, 128>}, {pipeline_mode = #tpu.pipeline_mode<synchronous>, transform_indices = @transform_12, window_bounds = array<i64: 8, 128>}]} {
    %c0 = arith.constant 0 : index
    %c0_0 = arith.constant 0 : index
    %0 = vector.load %arg3[%c0, %c0_0] : memref<8x128xf32, #tpu.memory_space<vmem>>, vector<8x128xf32>
    %1 = arith.truncf %0 : vector<8x128xf32> to vector<8x128xbf16>
    %c0_1 = arith.constant 0 : index
    %c0_2 = arith.constant 0 : index
    %2 = vector.load %arg6[%c0_1, %c0_2] : memref<128x128xbf16, #tpu.memory_space<vmem>>, vector<128x128xbf16>
    %cst = arith.constant dense<0.000000e+00> : vector<8x128xf32>
    %3 = tpu.matmul %1, %2, %cst {dimension_numbers = #tpu.dot_dimension_numbers<[1], [0], [0], [1], [0, 0, 1, 1], [], []>} : vector<8x128xbf16>, vector<128x128xbf16>, vector<8x128xf32> -> vector<8x128xf32>
    %c0_3 = arith.constant 0 : index
    %4 = memref.load %arg1[%c0_3] : memref<8xi32, #tpu.memory_space<smem>>
    %5 = arith.index_cast %4 : i32 to index
    %c0_4 = arith.constant 0 : index
    %6 = vector.load %arg2[%5, %c0_4] : memref<64x128xf32, #tpu.memory_space<vmem>>, vector<1x128xf32>
    %c1 = arith.constant 1 : index
    %7 = memref.load %arg1[%c1] : memref<8xi32, #tpu.memory_space<smem>>
    %8 = arith.index_cast %7 : i32 to index
    %c0_5 = arith.constant 0 : index
    %9 = vector.load %arg2[%8, %c0_5] : memref<64x128xf32, #tpu.memory_space<vmem>>, vector<1x128xf32>
    %c2 = arith.constant 2 : index
    %10 = memref.load %arg1[%c2] : memref<8xi32, #tpu.memory_space<smem>>
    %11 = arith.index_cast %10 : i32 to index
    %c0_6 = arith.constant 0 : index
    %12 = vector.load %arg2[%11, %c0_6] : memref<64x128xf32, #tpu.memory_space<vmem>>, vector<1x128xf32>
    %c3 = arith.constant 3 : index
    %13 = memref.load %arg1[%c3] : memref<8xi32, #tpu.memory_space<smem>>
    %14 = arith.index_cast %13 : i32 to index
    %c0_7 = arith.constant 0 : index
    %15 = vector.load %arg2[%14, %c0_7] : memref<64x128xf32, #tpu.memory_space<vmem>>, vector<1x128xf32>
    %c4 = arith.constant 4 : index
    %16 = memref.load %arg1[%c4] : memref<8xi32, #tpu.memory_space<smem>>
    %17 = arith.index_cast %16 : i32 to index
    %c0_8 = arith.constant 0 : index
    %18 = vector.load %arg2[%17, %c0_8] : memref<64x128xf32, #tpu.memory_space<vmem>>, vector<1x128xf32>
    %c5 = arith.constant 5 : index
    %19 = memref.load %arg1[%c5] : memref<8xi32, #tpu.memory_space<smem>>
    %20 = arith.index_cast %19 : i32 to index
    %c0_9 = arith.constant 0 : index
    %21 = vector.load %arg2[%20, %c0_9] : memref<64x128xf32, #tpu.memory_space<vmem>>, vector<1x128xf32>
    %c6 = arith.constant 6 : index
    %22 = memref.load %arg1[%c6] : memref<8xi32, #tpu.memory_space<smem>>
    %23 = arith.index_cast %22 : i32 to index
    %c0_10 = arith.constant 0 : index
    %24 = vector.load %arg2[%23, %c0_10] : memref<64x128xf32, #tpu.memory_space<vmem>>, vector<1x128xf32>
    %c7 = arith.constant 7 : index
    %25 = memref.load %arg1[%c7] : memref<8xi32, #tpu.memory_space<smem>>
    %26 = arith.index_cast %25 : i32 to index
    %c0_11 = arith.constant 0 : index
    %27 = vector.load %arg2[%26, %c0_11] : memref<64x128xf32, #tpu.memory_space<vmem>>, vector<1x128xf32>
    %28 = tpu.concatenate %6, %9, %12, %15, %18, %21, %24, %27 in 0 : vector<1x128xf32>, vector<1x128xf32>, vector<1x128xf32>, vector<1x128xf32>, vector<1x128xf32>, vector<1x128xf32>, vector<1x128xf32>, vector<1x128xf32> -> vector<8x128xf32>
    %29 = arith.truncf %28 : vector<8x128xf32> to vector<8x128xbf16>
    %c0_12 = arith.constant 0 : index
    %c0_13 = arith.constant 0 : index
    %30 = vector.load %arg5[%c0_12, %c0_13] : memref<128x128xbf16, #tpu.memory_space<vmem>>, vector<128x128xbf16>
    %cst_14 = arith.constant dense<0.000000e+00> : vector<8x128xf32>
    %31 = tpu.matmul %29, %30, %cst_14 {dimension_numbers = #tpu.dot_dimension_numbers<[1], [0], [0], [1], [0, 0, 1, 1], [], []>} : vector<8x128xbf16>, vector<128x128xbf16>, vector<8x128xf32> -> vector<8x128xf32>
    %32 = arith.addf %31, %3 : vector<8x128xf32>
    %c0_15 = arith.constant 0 : index
    %c0_16 = arith.constant 0 : index
    %33 = vector.load %arg7[%c0_15, %c0_16] : memref<1x128xf32, #tpu.memory_space<vmem>>, vector<1x128xf32>
    %34 = vector.broadcast %33 : vector<1x128xf32> to vector<8x128xf32>
    %35 = arith.addf %32, %34 : vector<8x128xf32>
    %36 = vector.extract_strided_slice %35 {offsets = [0, 0], sizes = [8, 32], strides = [1, 1]} : vector<8x128xf32> to vector<8x32xf32>
    %37 = arith.negf %36 : vector<8x32xf32>
    %38 = math.exp %37 : vector<8x32xf32>
    %cst_17 = arith.constant 1.000000e+00 : f32
    %39 = vector.broadcast %cst_17 : f32 to vector<8x32xf32>
    %40 = arith.addf %39, %38 : vector<8x32xf32>
    %41 = arith.divf %39, %40 : vector<8x32xf32>
    %42 = vector.extract_strided_slice %35 {offsets = [0, 32], sizes = [8, 32], strides = [1, 1]} : vector<8x128xf32> to vector<8x32xf32>
    %43 = arith.negf %42 : vector<8x32xf32>
    %44 = math.exp %43 : vector<8x32xf32>
    %cst_18 = arith.constant 1.000000e+00 : f32
    %45 = vector.broadcast %cst_18 : f32 to vector<8x32xf32>
    %46 = arith.addf %45, %44 : vector<8x32xf32>
    %47 = arith.divf %45, %46 : vector<8x32xf32>
    %48 = vector.extract_strided_slice %35 {offsets = [0, 64], sizes = [8, 32], strides = [1, 1]} : vector<8x128xf32> to vector<8x32xf32>
    %49 = vector.extract_strided_slice %35 {offsets = [0, 96], sizes = [8, 32], strides = [1, 1]} : vector<8x128xf32> to vector<8x32xf32>
    %50 = arith.mulf %41, %49 : vector<8x32xf32>
    %51 = arith.addf %48, %50 : vector<8x32xf32>
    %52 = math.tanh %51 : vector<8x32xf32>
    %cst_19 = arith.constant 1.000000e+00 : f32
    %53 = vector.broadcast %cst_19 : f32 to vector<8x32xf32>
    %54 = arith.subf %53, %47 : vector<8x32xf32>
    %55 = arith.mulf %54, %52 : vector<8x32xf32>
    %56 = vector.extract_strided_slice %0 {offsets = [0, 0], sizes = [8, 32], strides = [1, 1]} : vector<8x128xf32> to vector<8x32xf32>
    %57 = arith.mulf %47, %56 : vector<8x32xf32>
    %58 = arith.addf %55, %57 : vector<8x32xf32>
    %cst_20 = arith.constant 0.000000e+00 : f32
    %59 = vector.broadcast %cst_20 : f32 to vector<8x96xf32>
    %60 = tpu.concatenate %58, %59 in 1 : vector<8x32xf32>, vector<8x96xf32> -> vector<8x128xf32>
    %c0_21 = arith.constant 0 : index
    %c0_22 = arith.constant 0 : index
    %c0_23 = arith.constant 0 : index
    %61 = vector.load %arg4[%c0_21, %c0_22, %c0_23] : memref<8x8x128xf32, #tpu.memory_space<vmem>>, vector<8x8x128xf32>
    %62 = vector.shape_cast %60 : vector<8x128xf32> to vector<8x1x128xf32>
    %63 = vector.broadcast %62 : vector<8x1x128xf32> to vector<8x8x128xf32>
    %64 = arith.mulf %63, %61 : vector<8x8x128xf32>
    %cst_24 = arith.constant dense<0.000000e+00> : vector<8x8xf32>
    %65 = vector.multi_reduction <add>, %64, %cst_24 [2] : vector<8x8x128xf32> to vector<8x8xf32>
    %cst_25 = arith.constant dense<0xFF800000> : vector<8xf32>
    %66 = vector.multi_reduction <maximumf>, %65, %cst_25 [1] : vector<8x8xf32> to vector<8xf32>
    %67 = vector.shape_cast %66 : vector<8xf32> to vector<8x1xf32>
    %68 = vector.broadcast %67 : vector<8x1xf32> to vector<8x8xf32>
    %69 = arith.subf %65, %68 : vector<8x8xf32>
    %70 = math.exp %69 : vector<8x8xf32>
    %cst_26 = arith.constant dense<0.000000e+00> : vector<8xf32>
    %71 = vector.multi_reduction <add>, %70, %cst_26 [1] : vector<8x8xf32> to vector<8xf32>
    %72 = vector.shape_cast %71 : vector<8xf32> to vector<8x1xf32>
    %73 = tpu.reciprocal %72 {approx = true} : vector<8x1xf32> -> vector<8x1xf32>
    %74 = arith.mulf %72, %73 : vector<8x1xf32>
    %cst_27 = arith.constant 2.000000e+00 : f32
    %75 = vector.broadcast %cst_27 : f32 to vector<8x1xf32>
    %76 = arith.subf %75, %74 : vector<8x1xf32>
    %77 = arith.mulf %73, %76 : vector<8x1xf32>
    %78 = vector.broadcast %77 : vector<8x1xf32> to vector<8x8xf32>
    %79 = arith.mulf %70, %78 : vector<8x8xf32>
    %80 = vector.shape_cast %79 : vector<8x8xf32> to vector<8x8x1xf32>
    %81 = vector.broadcast %80 : vector<8x8x1xf32> to vector<8x8x128xf32>
    %82 = arith.mulf %81, %61 : vector<8x8x128xf32>
    %cst_28 = arith.constant dense<0.000000e+00> : vector<8x128xf32>
    %83 = vector.multi_reduction <add>, %82, %cst_28 [1] : vector<8x8x128xf32> to vector<8x128xf32>
    %84 = arith.truncf %60 : vector<8x128xf32> to vector<8x128xbf16>
    %c0_29 = arith.constant 0 : index
    %c0_30 = arith.constant 0 : index
    %85 = vector.load %arg8[%c0_29, %c0_30] : memref<128x128xbf16, #tpu.memory_space<vmem>>, vector<128x128xbf16>
    %cst_31 = arith.constant dense<0.000000e+00> : vector<8x128xf32>
    %86 = tpu.matmul %84, %85, %cst_31 {dimension_numbers = #tpu.dot_dimension_numbers<[1], [0], [0], [1], [0, 0, 1, 1], [], []>} : vector<8x128xbf16>, vector<128x128xbf16>, vector<8x128xf32> -> vector<8x128xf32>
    %87 = arith.truncf %83 : vector<8x128xf32> to vector<8x128xbf16>
    %c0_32 = arith.constant 0 : index
    %c0_33 = arith.constant 0 : index
    %88 = vector.load %arg9[%c0_32, %c0_33] : memref<128x128xbf16, #tpu.memory_space<vmem>>, vector<128x128xbf16>
    %cst_34 = arith.constant dense<0.000000e+00> : vector<8x128xf32>
    %89 = tpu.matmul %87, %88, %cst_34 {dimension_numbers = #tpu.dot_dimension_numbers<[1], [0], [0], [1], [0, 0, 1, 1], [], []>} : vector<8x128xbf16>, vector<128x128xbf16>, vector<8x128xf32> -> vector<8x128xf32>
    %90 = arith.addf %86, %89 : vector<8x128xf32>
    %c0_35 = arith.constant 0 : index
    %c0_36 = arith.constant 0 : index
    %91 = vector.load %arg10[%c0_35, %c0_36] : memref<1x128xf32, #tpu.memory_space<vmem>>, vector<1x128xf32>
    %92 = vector.broadcast %91 : vector<1x128xf32> to vector<8x128xf32>
    %93 = arith.addf %90, %92 : vector<8x128xf32>
    %94 = math.tanh %93 : vector<8x128xf32>
    %95 = arith.truncf %94 : vector<8x128xf32> to vector<8x128xbf16>
    %c0_37 = arith.constant 0 : index
    %c0_38 = arith.constant 0 : index
    %96 = vector.load %arg11[%c0_37, %c0_38] : memref<128x128xbf16, #tpu.memory_space<vmem>>, vector<128x128xbf16>
    %cst_39 = arith.constant dense<0.000000e+00> : vector<8x128xf32>
    %97 = tpu.matmul %95, %96, %cst_39 {dimension_numbers = #tpu.dot_dimension_numbers<[1], [0], [0], [1], [0, 0, 1, 1], [], []>} : vector<8x128xbf16>, vector<128x128xbf16>, vector<8x128xf32> -> vector<8x128xf32>
    %c0_40 = arith.constant 0 : index
    %c0_41 = arith.constant 0 : index
    %98 = vector.load %arg12[%c0_40, %c0_41] : memref<1x128xf32, #tpu.memory_space<vmem>>, vector<1x128xf32>
    %99 = vector.broadcast %98 : vector<1x128xf32> to vector<8x128xf32>
    %100 = arith.addf %97, %99 : vector<8x128xf32>
    %cst_42 = arith.constant dense<0xFF800000> : vector<8xf32>
    %101 = vector.multi_reduction <maximumf>, %100, %cst_42 [1] : vector<8x128xf32> to vector<8xf32>
    %102 = vector.shape_cast %101 : vector<8xf32> to vector<8x1xf32>
    %103 = vector.broadcast %102 : vector<8x1xf32> to vector<8x128xf32>
    %104 = arith.subf %100, %103 : vector<8x128xf32>
    %105 = math.exp %104 : vector<8x128xf32>
    %cst_43 = arith.constant dense<0.000000e+00> : vector<8xf32>
    %106 = vector.multi_reduction <add>, %105, %cst_43 [1] : vector<8x128xf32> to vector<8xf32>
    %107 = vector.shape_cast %106 : vector<8xf32> to vector<8x1xf32>
    %108 = tpu.reciprocal %107 {approx = true} : vector<8x1xf32> -> vector<8x1xf32>
    %109 = arith.mulf %107, %108 : vector<8x1xf32>
    %cst_44 = arith.constant 2.000000e+00 : f32
    %110 = vector.broadcast %cst_44 : f32 to vector<8x1xf32>
    %111 = arith.subf %110, %109 : vector<8x1xf32>
    %112 = arith.mulf %108, %111 : vector<8x1xf32>
    %113 = vector.broadcast %112 : vector<8x1xf32> to vector<8x128xf32>
    %114 = arith.mulf %105, %113 : vector<8x128xf32>
    %c0_45 = arith.constant 0 : index
    %c0_46 = arith.constant 0 : index
    %115 = vector.load %arg13[%c0_45, %c0_46] : memref<8x128xf32, #tpu.memory_space<vmem>>, vector<8x128xf32>
    tpu.vector_store %arg13[%c0_45, %c0_46], %114 {strides = array<i32>} : memref<8x128xf32, #tpu.memory_space<vmem>>, vector<8x128xf32>,
    %c0_47 = arith.constant 0 : index
    %c0_48 = arith.constant 0 : index
    %116 = vector.load %arg14[%c0_47, %c0_48] : memref<8x128xf32, #tpu.memory_space<vmem>>, vector<8x128xf32>
    tpu.vector_store %arg14[%c0_47, %c0_48], %60 {strides = array<i32>} : memref<8x128xf32, #tpu.memory_space<vmem>>, vector<8x128xf32>,
    return
  }
  func.func @transform_0(%arg0: i32, %arg1: memref<8xi32, #tpu.memory_space<smem>>) -> (i32, i32) {
    %c0_i32 = arith.constant 0 : i32
    %c0_i32_0 = arith.constant 0 : i32
    %c0_i32_1 = arith.constant 0 : i32
    return %c0_i32, %c0_i32_0 : i32, i32
  }
  func.func @transform_1(%arg0: i32, %arg1: memref<8xi32, #tpu.memory_space<smem>>) -> (i32, i32) {
    %c0_i32 = arith.constant 0 : i32
    %c0_i32_0 = arith.constant 0 : i32
    %c0_i32_1 = arith.constant 0 : i32
    return %c0_i32, %c0_i32_0 : i32, i32
  }
  func.func @transform_2(%arg0: i32, %arg1: memref<8xi32, #tpu.memory_space<smem>>) -> (i32, i32, i32) {
    %c0_i32 = arith.constant 0 : i32
    %c0_i32_0 = arith.constant 0 : i32
    %c0_i32_1 = arith.constant 0 : i32
    %c0_i32_2 = arith.constant 0 : i32
    return %c0_i32, %c0_i32_0, %c0_i32_1 : i32, i32, i32
  }
  func.func @transform_3(%arg0: i32, %arg1: memref<8xi32, #tpu.memory_space<smem>>) -> (i32, i32) {
    %c0_i32 = arith.constant 0 : i32
    %c0_i32_0 = arith.constant 0 : i32
    %c0_i32_1 = arith.constant 0 : i32
    return %c0_i32, %c0_i32_0 : i32, i32
  }
  func.func @transform_4(%arg0: i32, %arg1: memref<8xi32, #tpu.memory_space<smem>>) -> (i32, i32) {
    %c0_i32 = arith.constant 0 : i32
    %c0_i32_0 = arith.constant 0 : i32
    %c0_i32_1 = arith.constant 0 : i32
    return %c0_i32, %c0_i32_0 : i32, i32
  }
  func.func @transform_5(%arg0: i32, %arg1: memref<8xi32, #tpu.memory_space<smem>>) -> (i32, i32) {
    %c0_i32 = arith.constant 0 : i32
    %c0_i32_0 = arith.constant 0 : i32
    %c0_i32_1 = arith.constant 0 : i32
    return %c0_i32, %c0_i32_0 : i32, i32
  }
  func.func @transform_6(%arg0: i32, %arg1: memref<8xi32, #tpu.memory_space<smem>>) -> (i32, i32) {
    %c0_i32 = arith.constant 0 : i32
    %c0_i32_0 = arith.constant 0 : i32
    %c0_i32_1 = arith.constant 0 : i32
    return %c0_i32, %c0_i32_0 : i32, i32
  }
  func.func @transform_7(%arg0: i32, %arg1: memref<8xi32, #tpu.memory_space<smem>>) -> (i32, i32) {
    %c0_i32 = arith.constant 0 : i32
    %c0_i32_0 = arith.constant 0 : i32
    %c0_i32_1 = arith.constant 0 : i32
    return %c0_i32, %c0_i32_0 : i32, i32
  }
  func.func @transform_8(%arg0: i32, %arg1: memref<8xi32, #tpu.memory_space<smem>>) -> (i32, i32) {
    %c0_i32 = arith.constant 0 : i32
    %c0_i32_0 = arith.constant 0 : i32
    %c0_i32_1 = arith.constant 0 : i32
    return %c0_i32, %c0_i32_0 : i32, i32
  }
  func.func @transform_9(%arg0: i32, %arg1: memref<8xi32, #tpu.memory_space<smem>>) -> (i32, i32) {
    %c0_i32 = arith.constant 0 : i32
    %c0_i32_0 = arith.constant 0 : i32
    %c0_i32_1 = arith.constant 0 : i32
    return %c0_i32, %c0_i32_0 : i32, i32
  }
  func.func @transform_10(%arg0: i32, %arg1: memref<8xi32, #tpu.memory_space<smem>>) -> (i32, i32) {
    %c0_i32 = arith.constant 0 : i32
    %c0_i32_0 = arith.constant 0 : i32
    %c0_i32_1 = arith.constant 0 : i32
    return %c0_i32, %c0_i32_0 : i32, i32
  }
  func.func @transform_11(%arg0: i32, %arg1: memref<8xi32, #tpu.memory_space<smem>>) -> (i32, i32) {
    %c0_i32 = arith.constant 0 : i32
    %c0_i32_0 = arith.constant 0 : i32
    %c0_i32_1 = arith.constant 0 : i32
    return %c0_i32, %c0_i32_0 : i32, i32
  }
  func.func @transform_12(%arg0: i32, %arg1: memref<8xi32, #tpu.memory_space<smem>>) -> (i32, i32) {
    %c0_i32 = arith.constant 0 : i32
    %c0_i32_0 = arith.constant 0 : i32
    %c0_i32_1 = arith.constant 0 : i32
    return %c0_i32, %c0_i32_0 : i32, i32
  }
}

</mosaic_0001>

<llo_original>
// kernel: tpu_custom_call.1
$region0: #{tpu_custom_call.1}
  #allocation0 [shape = 'u32[]', space=smem, size = 0x4, offset = 0x4, fixed_abs, tag = 'smem constant byte address 0x4 - core index']
  #allocation1 [shape = 'u32[144,128]{1,0:T(1,128)}', space=vmem, size = 0x12000, scoped, tag = 'internal scratch']
  #allocation2 [shape = 's32[1]{0}', space=sflag, size = 0x4, scoped, tag = 'scoped memory for tpu_custom_call.1']
  #allocation3 [shape = 'u8[512]{0}', space=smem, size = 0x200, scoped, tag = 'prefetched SMEM operand 0']
  %s0 = inlined_call_operand.hbm [shape: s32[8], index: 0, kind: input, shape index: {}]
  %s1 = inlined_call_operand.hbm [shape: f32[64,128], index: 1, kind: input, shape index: {}]
  %s2 = inlined_call_operand.hbm [shape: f32[8,128], index: 2, kind: input, shape index: {}]
  %s3 = inlined_call_operand.hbm [shape: f32[8,8,128], index: 3, kind: input, shape index: {}]
  %s4 = inlined_call_operand.hbm [shape: bf16[128,128], index: 4, kind: input, shape index: {}]
  %s5 = inlined_call_operand.hbm [shape: bf16[128,128], index: 5, kind: input, shape index: {}]
  %s6 = inlined_call_operand.vmem [shape: f32[1,128], index: 6, kind: input, shape index: {}]
  %s7 = inlined_call_operand.hbm [shape: bf16[128,128], index: 7, kind: input, shape index: {}]
  %s8 = inlined_call_operand.hbm [shape: bf16[128,128], index: 8, kind: input, shape index: {}]
  %s9 = inlined_call_operand.vmem [shape: f32[1,128], index: 9, kind: input, shape index: {}]
  %s10 = inlined_call_operand.hbm [shape: bf16[128,128], index: 10, kind: input, shape index: {}]
  %s11 = inlined_call_operand.vmem [shape: f32[1,128], index: 11, kind: input, shape index: {}]
  %s12 = inlined_call_operand.hbm [shape: f32[8,128], index: 12, kind: output, shape index: {0}]
  %s13 = inlined_call_operand.hbm [shape: f32[8,128], index: 13, kind: output, shape index: {1}]
  %14 = xla_tuple %s12, %s13
  %s15 = sld [smem:[#allocation0]]
  $region94: #{tpu_custom_call.1} parent=0
    _
  %s17 = ssub.s32 1, %s15
  %s18 = scalar_select 0, %s17, %s15
  %20 = dma.hbm_to_smem %s0, 16, [#allocation3], [#allocation2]
  %21 = dma.done [#allocation2], 16
  %22 = sfence
  $region1: #{tpu_custom_call.1} parent=0
    #allocation4 [shape = 'u8[32768]{0}', space=vmem, size = 0x8000, scoped, tag = 'input window, operand 1, single buffered']
    #allocation5 [shape = 's32[1]{0}', space=sflag, size = 0x4, scoped, tag = 'scoped memory for tpu_custom_call.1']
    #allocation6 [shape = 's32[1]{0}', space=sflag, size = 0x4, scoped, tag = 'scoped memory for tpu_custom_call.1']
    #allocation7 [shape = 'u8[4096]{0}', space=vmem, size = 0x1000, scoped, tag = 'input window, operand 2, single buffered']
    #allocation8 [shape = 's32[1]{0}', space=sflag, size = 0x4, scoped, tag = 'scoped memory for tpu_custom_call.1']
    #allocation9 [shape = 'u8[32768]{0}', space=vmem, size = 0x8000, scoped, tag = 'input window, operand 3, single buffered']
    #allocation10 [shape = 'u8[32768]{0}', space=vmem, size = 0x8000, scoped, tag = 'input window, operand 4, single buffered']
    #allocation11 [shape = 's32[1]{0}', space=sflag, size = 0x4, scoped, tag = 'scoped memory for tpu_custom_call.1']
    #allocation12 [shape = 'u8[32768]{0}', space=vmem, size = 0x8000, scoped, tag = 'input window, operand 5, single buffered']
    #allocation13 [shape = 'u8[32768]{0}', space=vmem, size = 0x8000, scoped, tag = 'input window, operand 7, single buffered']
    #allocation14 [shape = 's32[1]{0}', space=sflag, size = 0x4, scoped, tag = 'scoped memory for tpu_custom_call.1']
    #allocation15 [shape = 'u8[32768]{0}', space=vmem, size = 0x8000, scoped, tag = 'input window, operand 8, single buffered']
    #allocation16 [shape = 'u8[32768]{0}', space=vmem, size = 0x8000, scoped, tag = 'input window, operand 10, single buffered']
    #allocation17 [shape = 's32[1]{0}', space=sflag, size = 0x4, scoped, tag = 'scoped memory for tpu_custom_call.1']
    #allocation18 [shape = 'u8[4096]{0}', space=vmem, size = 0x1000, scoped, tag = 'output window, operand 0, single buffered']
    #allocation19 [shape = 'u8[4096]{0}', space=vmem, size = 0x1000, scoped, tag = 'output window, operand 1, single buffered']
    #allocation20 [shape = 's32[1]{0}', space=sflag, size = 0x4, scoped, tag = 'scoped memory for tpu_custom_call.1']
    %23 = vsyncpa [#allocation5], 0
    %24 = vsyncpa [#allocation8], 0
    %25 = vsyncpa [#allocation11], 0
    %26 = vsyncpa [#allocation14], 0
    %27 = vsyncpa [#allocation17], 0
    %28 = vsyncpa [#allocation6], 0
    %29 = vsyncpa [#allocation20], 0
    // Predicated region
    $region2: #{tpu_custom_call.1} parent=1 // pred_check
      _
    $region3: #{tpu_custom_call.1} parent=1 // pred_check_branch
      %31 = sbr.rel (0) target = $region5
    $region4: #{tpu_custom_call.1} parent=1 // pred_region
      %s33 = ssub.s32 1024, 1024
      %34 = vsyncadd [#allocation5], %s33
      %s35 = sshll.u32 [#allocation4], 4
      %s36 = int_to_ptr.vmem [resolvable:$true] %s35
      %41 = dma.hbm_to_vmem [thread:$0]  %s1, 1024, %s36, [#allocation5], 128, 128, 8
    $region5: #{tpu_custom_call.1} parent=1 // pred_fallthru
      _
    // Predicated region
    $region6: #{tpu_custom_call.1} parent=1 // pred_check
      _
    $region7: #{tpu_custom_call.1} parent=1 // pred_check_branch
      %43 = sbr.rel (0) target = $region9
    $region8: #{tpu_custom_call.1} parent=1 // pred_region
      %s45 = ssub.s32 128, 128
      %46 = vsyncadd [#allocation8], %s45
      %s48 = sshll.u32 [#allocation7], 4
      %s49 = int_to_ptr.vmem [resolvable:$true] %s48
      %51 = dma.hbm_to_vmem [thread:$0]  %s2, 128, %s49, [#allocation8]
    $region9: #{tpu_custom_call.1} parent=1 // pred_fallthru
      _
    // Predicated region
    $region10: #{tpu_custom_call.1} parent=1 // pred_check
      _
    $region11: #{tpu_custom_call.1} parent=1 // pred_check_branch
      %53 = sbr.rel (0) target = $region13
    $region12: #{tpu_custom_call.1} parent=1 // pred_region
      %s55 = ssub.s32 1024, 1024
      %56 = vsyncadd [#allocation8], %s55
      %s57 = sshll.u32 [#allocation9], 4
      %s58 = int_to_ptr.vmem [resolvable:$true] %s57
      %63 = dma.hbm_to_vmem [thread:$0]  %s3, 1024, %s58, [#allocation8], 128, 128, 8
    $region13: #{tpu_custom_call.1} parent=1 // pred_fallthru
      _
    // Predicated region
    $region14: #{tpu_custom_call.1} parent=1 // pred_check
      _
    $region15: #{tpu_custom_call.1} parent=1 // pred_check_branch
      %65 = sbr.rel (0) target = $region17
    $region16: #{tpu_custom_call.1} parent=1 // pred_region
      %s67 = ssub.s32 1024, 1024
      %68 = vsyncadd [#allocation11], %s67
      %s69 = sshll.u32 [#allocation10], 4
      %s70 = int_to_ptr.vmem [resolvable:$true] %s69
      %75 = dma.hbm_to_vmem [thread:$0]  %s4, 1024, %s70, [#allocation11], 64, 64, 4
    $region17: #{tpu_custom_call.1} parent=1 // pred_fallthru
      _
    // Predicated region
    $region18: #{tpu_custom_call.1} parent=1 // pred_check
      _
    $region19: #{tpu_custom_call.1} parent=1 // pred_check_branch
      %77 = sbr.rel (0) target = $region21
    $region20: #{tpu_custom_call.1} parent=1 // pred_region
      %s79 = ssub.s32 1024, 1024
      %80 = vsyncadd [#allocation11], %s79
      %s81 = sshll.u32 [#allocation12], 4
      %s82 = int_to_ptr.vmem [resolvable:$true] %s81
      %87 = dma.hbm_to_vmem [thread:$0]  %s5, 1024, %s82, [#allocation11], 64, 64, 4
    $region21: #{tpu_custom_call.1} parent=1 // pred_fallthru
      _
    // Predicated region
    $region22: #{tpu_custom_call.1} parent=1 // pred_check
      _
    $region23: #{tpu_custom_call.1} parent=1 // pred_check_branch
      %89 = sbr.rel (0) target = $region25
    $region24: #{tpu_custom_call.1} parent=1 // pred_region
      _
    $region25: #{tpu_custom_call.1} parent=1 // pred_fallthru
      _
    // Predicated region
    $region26: #{tpu_custom_call.1} parent=1 // pred_check
      _
    $region27: #{tpu_custom_call.1} parent=1 // pred_check_branch
      %91 = sbr.rel (0) target = $region29
    $region28: #{tpu_custom_call.1} parent=1 // pred_region
      %s93 = ssub.s32 1024, 1024
      %94 = vsyncadd [#allocation14], %s93
      %s95 = sshll.u32 [#allocation13], 4
      %s96 = int_to_ptr.vmem [resolvable:$true] %s95
      %101 = dma.hbm_to_vmem [thread:$0]  %s7, 1024, %s96, [#allocation14], 64, 64, 4
    $region29: #{tpu_custom_call.1} parent=1 // pred_fallthru
      _
    // Predicated region
    $region30: #{tpu_custom_call.1} parent=1 // pred_check
      _
    $region31: #{tpu_custom_call.1} parent=1 // pred_check_branch
      %103 = sbr.rel (0) target = $region33
    $region32: #{tpu_custom_call.1} parent=1 // pred_region
      %s105 = ssub.s32 1024, 1024
      %106 = vsyncadd [#allocation14], %s105
      %s107 = sshll.u32 [#allocation15], 4
      %s108 = int_to_ptr.vmem [resolvable:$true] %s107
      %113 = dma.hbm_to_vmem [thread:$0]  %s8, 1024, %s108, [#allocation14], 64, 64, 4
    $region33: #{tpu_custom_call.1} parent=1 // pred_fallthru
      _
    // Predicated region
    $region34: #{tpu_custom_call.1} parent=1 // pred_check
      _
    $region35: #{tpu_custom_call.1} parent=1 // pred_check_branch
      %115 = sbr.rel (0) target = $region37
    $region36: #{tpu_custom_call.1} parent=1 // pred_region
      _
    $region37: #{tpu_custom_call.1} parent=1 // pred_fallthru
      _
    // Predicated region
    $region38: #{tpu_custom_call.1} parent=1 // pred_check
      _
    $region39: #{tpu_custom_call.1} parent=1 // pred_check_branch
      %117 = sbr.rel (0) target = $region41
    $region40: #{tpu_custom_call.1} parent=1 // pred_region
      %s119 = ssub.s32 1024, 1024
      %120 = vsyncadd [#allocation17], %s119
      %s121 = sshll.u32 [#allocation16], 4
      %s122 = int_to_ptr.vmem [resolvable:$true] %s121
      %127 = dma.hbm_to_vmem [thread:$0]  %s10, 1024, %s122, [#allocation17], 64, 64, 4
    $region41: #{tpu_custom_call.1} parent=1 // pred_fallthru
      _
    // Predicated region
    $region42: #{tpu_custom_call.1} parent=1 // pred_check
      _
    $region43: #{tpu_custom_call.1} parent=1 // pred_check_branch
      %129 = sbr.rel (0) target = $region45
    $region44: #{tpu_custom_call.1} parent=1 // pred_region
      _
    $region45: #{tpu_custom_call.1} parent=1 // pred_fallthru
      _
    // Predicated region
    $region46: #{tpu_custom_call.1} parent=1 // pred_check
      _
    $region47: #{tpu_custom_call.1} parent=1 // pred_check_branch
      %131 = sbr.rel (0) target = $region49
    $region48: #{tpu_custom_call.1} parent=1 // pred_region
      %132 = dma.done [#allocation5], 1024
    $region49: #{tpu_custom_call.1} parent=1 // pred_fallthru
      _
    // Predicated region
    $region50: #{tpu_custom_call.1} parent=1 // pred_check
      _
    $region51: #{tpu_custom_call.1} parent=1 // pred_check_branch
      %134 = sbr.rel (0) target = $region53
    $region52: #{tpu_custom_call.1} parent=1 // pred_region
      %135 = dma.done [#allocation8], 128
    $region53: #{tpu_custom_call.1} parent=1 // pred_fallthru
      _
    // Predicated region
    $region54: #{tpu_custom_call.1} parent=1 // pred_check
      _
    $region55: #{tpu_custom_call.1} parent=1 // pred_check_branch
      %137 = sbr.rel (0) target = $region57
    $region56: #{tpu_custom_call.1} parent=1 // pred_region
      %138 = dma.done [#allocation8], 1024
    $region57: #{tpu_custom_call.1} parent=1 // pred_fallthru
      _
    // Predicated region
    $region58: #{tpu_custom_call.1} parent=1 // pred_check
      _
    $region59: #{tpu_custom_call.1} parent=1 // pred_check_branch
      %140 = sbr.rel (0) target = $region61
    $region60: #{tpu_custom_call.1} parent=1 // pred_region
      %141 = dma.done [#allocation11], 1024
    $region61: #{tpu_custom_call.1} parent=1 // pred_fallthru
      _
    // Predicated region
    $region62: #{tpu_custom_call.1} parent=1 // pred_check
      _
    $region63: #{tpu_custom_call.1} parent=1 // pred_check_branch
      %143 = sbr.rel (0) target = $region65
    $region64: #{tpu_custom_call.1} parent=1 // pred_region
      %144 = dma.done [#allocation11], 1024
    $region65: #{tpu_custom_call.1} parent=1 // pred_fallthru
      _
    // Predicated region
    $region66: #{tpu_custom_call.1} parent=1 // pred_check
      _
    $region67: #{tpu_custom_call.1} parent=1 // pred_check_branch
      %146 = sbr.rel (0) target = $region69
    $region68: #{tpu_custom_call.1} parent=1 // pred_region
      %147 = dma.done [#allocation14], 1024
    $region69: #{tpu_custom_call.1} parent=1 // pred_fallthru
      _
    // Predicated region
    $region70: #{tpu_custom_call.1} parent=1 // pred_check
      _
    $region71: #{tpu_custom_call.1} parent=1 // pred_check_branch
      %149 = sbr.rel (0) target = $region73
    $region72: #{tpu_custom_call.1} parent=1 // pred_region
      %150 = dma.done [#allocation14], 1024
    $region73: #{tpu_custom_call.1} parent=1 // pred_fallthru
      _
    // Predicated region
    $region74: #{tpu_custom_call.1} parent=1 // pred_check
      _
    $region75: #{tpu_custom_call.1} parent=1 // pred_check_branch
      %152 = sbr.rel (0) target = $region77
    $region76: #{tpu_custom_call.1} parent=1 // pred_region
      %153 = dma.done [#allocation17], 1024
    $region77: #{tpu_custom_call.1} parent=1 // pred_fallthru
      _
    %v155 = vld [vmem:[#allocation7] sm:$0xff]
    %v156 = vpack.c.bf16 %v155, %v155
    %v157 = vld [vmem:[#allocation12] sm:$0xf]
    %v158 = vld [vmem:[#allocation12 + $0x4] sm:$0xf]
    %v159 = vld [vmem:[#allocation12 + $0x8] sm:$0xf]
    %v160 = vld [vmem:[#allocation12 + $0xc] sm:$0xf]
    %v161 = vld [vmem:[#allocation12 + $0x10] sm:$0xf]
    %v162 = vld [vmem:[#allocation12 + $0x14] sm:$0xf]
    %v163 = vld [vmem:[#allocation12 + $0x18] sm:$0xf]
    %v164 = vld [vmem:[#allocation12 + $0x1c] sm:$0xf]
    %v165 = vld [vmem:[#allocation12 + $0x20] sm:$0xf]
    %v166 = vld [vmem:[#allocation12 + $0x24] sm:$0xf]
    %v167 = vld [vmem:[#allocation12 + $0x28] sm:$0xf]
    %v168 = vld [vmem:[#allocation12 + $0x2c] sm:$0xf]
    %v169 = vld [vmem:[#allocation12 + $0x30] sm:$0xf]
    %v170 = vld [vmem:[#allocation12 + $0x34] sm:$0xf]
    %v171 = vld [vmem:[#allocation12 + $0x38] sm:$0xf]
    %v172 = vld [vmem:[#allocation12 + $0x3c] sm:$0xf]
    %v189 = vunpack.c.l.b16 %v157
    %v190 = vunpack.c.l.b16 %v158
    %v191 = vunpack.c.l.b16 %v159
    %v192 = vunpack.c.l.b16 %v160
    %v193 = vunpack.c.l.b16 %v161
    %v194 = vunpack.c.l.b16 %v162
    %v195 = vunpack.c.l.b16 %v163
    %v196 = vunpack.c.l.b16 %v164
    %v197 = vunpack.c.l.b16 %v165
    %v198 = vunpack.c.l.b16 %v166
    %v199 = vunpack.c.l.b16 %v167
    %v200 = vunpack.c.l.b16 %v168
    %v201 = vunpack.c.l.b16 %v169
    %v202 = vunpack.c.l.b16 %v170
    %v203 = vunpack.c.l.b16 %v171
    %v204 = vunpack.c.l.b16 %v172
    %v205 = vpack.c.b16 %v190, %v189
    %v206 = vpack.c.b16 %v192, %v191
    %v207 = vpack.c.b16 %v194, %v193
    %v208 = vpack.c.b16 %v196, %v195
    %v209 = vpack.c.b16 %v198, %v197
    %v210 = vpack.c.b16 %v200, %v199
    %v211 = vpack.c.b16 %v202, %v201
    %v212 = vpack.c.b16 %v204, %v203
    %221 = vmatprep.subr.bf16.mxu0 0
    %222 = vmatpush1.bf16.msra.mxu0 %v205
    %223 = vmatprep.subr.bf16.mxu0 0
    %224 = vmatpush1.bf16.msra.mxu0 %v206
    %225 = vmatprep.subr.bf16.mxu0 0
    %226 = vmatpush1.bf16.msra.mxu0 %v207
    %227 = vmatprep.subr.bf16.mxu0 0
    %228 = vmatpush1.bf16.msra.mxu0 %v208
    %229 = vmatprep.subr.bf16.mxu0 0
    %230 = vmatpush1.bf16.msra.mxu0 %v209
    %231 = vmatprep.subr.bf16.mxu0 0
    %232 = vmatpush1.bf16.msra.mxu0 %v210
    %233 = vmatprep.subr.bf16.mxu0 0
    %234 = vmatpush1.bf16.msra.mxu0 %v211
    %235 = vmatprep.subr.bf16.mxu0 0
    %236 = vmatpush1.bf16.msra.mxu0 %v212
    %237 = vmatprep.subr.bf16.mxu0 0
    %238 = vmatpush1.bf16.msra.mxu0 0
    %239 = vmatprep.subr.bf16.mxu0 0
    %240 = vmatpush1.bf16.msra.mxu0 0
    %241 = vmatprep.subr.bf16.mxu0 0
    %242 = vmatpush1.bf16.msra.mxu0 0
    %243 = vmatprep.subr.bf16.mxu0 0
    %244 = vmatpush1.bf16.msra.mxu0 0
    %245 = vmatprep.subr.bf16.mxu0 0
    %246 = vmatpush1.bf16.msra.mxu0 0
    %247 = vmatprep.subr.bf16.mxu0 0
    %248 = vmatpush1.bf16.msra.mxu0 0
    %249 = vmatprep.subr.bf16.mxu0 0
    %250 = vmatpush1.bf16.msra.mxu0 0
    %251 = vmatprep.subr.bf16.mxu0 0
    %252 = vmatpush1.bf16.msra.mxu0 0
    %253 = vmatprep.mubr.bf16.mxu0 0
    %254 = vmatmul.mubr.bf16.gmra.mrb[0].mxu0 %v156
    %v255 = vpop.f32.mrb[0].mxu0
    %v256 = vadd.f32 0.0, %v255
    %v257 = vpop.f32.mrb[0].mxu0
    %v258 = vpop.f32.mrb[0].mxu0
    %v259 = vpop.f32.mrb[0].mxu0
    %260 = vdwg.mxu0
    %s261 = sld [smem:[#allocation3]]
    %s262 = scalar_lea.vmem [#allocation4], %s261
    %v263 = vld [vmem:[%s262] sm:$0x1]
    %s264 = sld [smem:[#allocation3 + $0x1]]
    %s265 = scalar_lea.vmem [#allocation4], %s264
    %v266 = vld [vmem:[%s265] sm:$0x1]
    %s267 = sld [smem:[#allocation3 + $0x2]]
    %s268 = scalar_lea.vmem [#allocation4], %s267
    %v269 = vld [vmem:[%s268] sm:$0x1]
    %s270 = sld [smem:[#allocation3 + $0x3]]
    %s271 = scalar_lea.vmem [#allocation4], %s270
    %v272 = vld [vmem:[%s271] sm:$0x1]
    %s273 = sld [smem:[#allocation3 + $0x4]]
    %s274 = scalar_lea.vmem [#allocation4], %s273
    %v275 = vld [vmem:[%s274] sm:$0x1]
    %s276 = sld [smem:[#allocation3 + $0x5]]
    %s277 = scalar_lea.vmem [#allocation4], %s276
    %v278 = vld [vmem:[%s277] sm:$0x1]
    %s279 = sld [smem:[#allocation3 + $0x6]]
    %s280 = scalar_lea.vmem [#allocation4], %s279
    %v281 = vld [vmem:[%s280] sm:$0x1]
    %s282 = sld [smem:[#allocation3 + $0x7]]
    %s283 = scalar_lea.vmem [#allocation4], %s282
    %v284 = vld [vmem:[%s283] sm:$0x1]
    %v286 = vrot.slane %v266, 7
    %v289 = vrot.slane %v269, 6
    %v292 = vrot.slane %v272, 5
    %v295 = vrot.slane %v275, 4
    %v298 = vrot.slane %v278, 3
    %v301 = vrot.slane %v281, 2
    %v304 = vrot.slane %v284, 1
    %vm306 = vcmask 1040384
    %v307 = vsel %vm306, %v263, %v286
    %vm308 = vcmask 1041408
    %v309 = vsel %vm308, %v307, %v289
    %vm310 = vcmask 1042432
    %v311 = vsel %vm310, %v309, %v292
    %vm312 = vcmask 1043456
    %v313 = vsel %vm312, %v311, %v295
    %vm314 = vcmask 1044480
    %v315 = vsel %vm314, %v313, %v298
    %vm316 = vcmask 1045504
    %v317 = vsel %vm316, %v315, %v301
    %vm318 = vcmask 1046528
    %v319 = vsel %vm318, %v317, %v304
    %v320 = vpack.c.bf16 %v319, %v319
    %v321 = vld [vmem:[#allocation10] sm:$0xf]
    %v322 = vld [vmem:[#allocation10 + $0x4] sm:$0xf]
    %v323 = vld [vmem:[#allocation10 + $0x8] sm:$0xf]
    %v324 = vld [vmem:[#allocation10 + $0xc] sm:$0xf]
    %v325 = vld [vmem:[#allocation10 + $0x10] sm:$0xf]
    %v326 = vld [vmem:[#allocation10 + $0x14] sm:$0xf]
    %v327 = vld [vmem:[#allocation10 + $0x18] sm:$0xf]
    %v328 = vld [vmem:[#allocation10 + $0x1c] sm:$0xf]
    %v329 = vld [vmem:[#allocation10 + $0x20] sm:$0xf]
    %v330 = vld [vmem:[#allocation10 + $0x24] sm:$0xf]
    %v331 = vld [vmem:[#allocation10 + $0x28] sm:$0xf]
    %v332 = vld [vmem:[#allocation10 + $0x2c] sm:$0xf]
    %v333 = vld [vmem:[#allocation10 + $0x30] sm:$0xf]
    %v334 = vld [vmem:[#allocation10 + $0x34] sm:$0xf]
    %v335 = vld [vmem:[#allocation10 + $0x38] sm:$0xf]
    %v336 = vld [vmem:[#allocation10 + $0x3c] sm:$0xf]
    %v353 = vunpack.c.l.b16 %v321
    %v354 = vunpack.c.l.b16 %v322
    %v355 = vunpack.c.l.b16 %v323
    %v356 = vunpack.c.l.b16 %v324
    %v357 = vunpack.c.l.b16 %v325
    %v358 = vunpack.c.l.b16 %v326
    %v359 = vunpack.c.l.b16 %v327
    %v360 = vunpack.c.l.b16 %v328
    %v361 = vunpack.c.l.b16 %v329
    %v362 = vunpack.c.l.b16 %v330
    %v363 = vunpack.c.l.b16 %v331
    %v364 = vunpack.c.l.b16 %v332
    %v365 = vunpack.c.l.b16 %v333
    %v366 = vunpack.c.l.b16 %v334
    %v367 = vunpack.c.l.b16 %v335
    %v368 = vunpack.c.l.b16 %v336
    %v369 = vpack.c.b16 %v354, %v353
    %v370 = vpack.c.b16 %v356, %v355
    %v371 = vpack.c.b16 %v358, %v357
    %v372 = vpack.c.b16 %v360, %v359
    %v373 = vpack.c.b16 %v362, %v361
    %v374 = vpack.c.b16 %v364, %v363
    %v375 = vpack.c.b16 %v366, %v365
    %v376 = vpack.c.b16 %v368, %v367
    %385 = vmatprep.subr.bf16.mxu0 0
    %386 = vmatpush1.bf16.msra.mxu0 %v369
    %387 = vmatprep.subr.bf16.mxu0 0
    %388 = vmatpush1.bf16.msra.mxu0 %v370
    %389 = vmatprep.subr.bf16.mxu0 0
    %390 = vmatpush1.bf16.msra.mxu0 %v371
    %391 = vmatprep.subr.bf16.mxu0 0
    %392 = vmatpush1.bf16.msra.mxu0 %v372
    %393 = vmatprep.subr.bf16.mxu0 0
    %394 = vmatpush1.bf16.msra.mxu0 %v373
    %395 = vmatprep.subr.bf16.mxu0 0
    %396 = vmatpush1.bf16.msra.mxu0 %v374
    %397 = vmatprep.subr.bf16.mxu0 0
    %398 = vmatpush1.bf16.msra.mxu0 %v375
    %399 = vmatprep.subr.bf16.mxu0 0
    %400 = vmatpush1.bf16.msra.mxu0 %v376
    %401 = vmatprep.subr.bf16.mxu0 0
    %402 = vmatpush1.bf16.msra.mxu0 0
    %403 = vmatprep.subr.bf16.mxu0 0
    %404 = vmatpush1.bf16.msra.mxu0 0
    %405 = vmatprep.subr.bf16.mxu0 0
    %406 = vmatpush1.bf16.msra.mxu0 0
    %407 = vmatprep.subr.bf16.mxu0 0
    %408 = vmatpush1.bf16.msra.mxu0 0
    %409 = vmatprep.subr.bf16.mxu0 0
    %410 = vmatpush1.bf16.msra.mxu0 0
    %411 = vmatprep.subr.bf16.mxu0 0
    %412 = vmatpush1.bf16.msra.mxu0 0
    %413 = vmatprep.subr.bf16.mxu0 0
    %414 = vmatpush1.bf16.msra.mxu0 0
    %415 = vmatprep.subr.bf16.mxu0 0
    %416 = vmatpush1.bf16.msra.mxu0 0
    %417 = vmatprep.mubr.bf16.mxu0 0
    %418 = vmatmul.mubr.bf16.gmra.mrb[0].mxu0 %v320
    %v419 = vpop.f32.mrb[0].mxu0
    %v420 = vadd.f32 %v256, %v419
    %v421 = vpop.f32.mrb[0].mxu0
    %v422 = vpop.f32.mrb[0].mxu0
    %v423 = vpop.f32.mrb[0].mxu0
    %424 = vdwg.mxu0
    %v425 = vld [vmem:[%s6] sm:$0x1]
    %v427 = vlaneseq
    %v428 = vshrl.u32 %v427, 7
    %v429 = vsub.s32 0, %v428
    %v430 = vrot.slane %v425, %v429
    %v432 = vadd.f32 %v420, %v430
    %v433 = vxor.u32 %v432, 2147483648
    %v434 = vmul.f32 %v433, 1.442695
    %v435 = vpow.pop %v434
    %v436 = vadd.f32 %v435, 1.0
    %v437 = vrcp.pop %v436
    %v438 = vmul.f32 1.0, %v437
    %440 = vrot.lane.b32.xlu0 %v432, 32
    %v441 = vpop.permute.xlu0 %440
    %v443 = vmul.f32 %v438, %v441
    %445 = vrot.lane.b32.xlu0 %v443, 64
    %v446 = vpop.permute.xlu0 %445
    %v448 = vadd.f32 %v432, %v446
    %v449 = vtanh.pop %v448
    %v450 = vsub.f32 1.0, %v438
    %452 = vrot.lane.b32.xlu0 %v449, 96
    %v453 = vpop.permute.xlu0 %452
    %v455 = vmul.f32 %v450, %v453
    %457 = vrot.lane.b32.xlu0 %v155, 32
    %v458 = vpop.permute.xlu0 %457
    %v460 = vmul.f32 %v438, %v458
    %v461 = vadd.f32 %v455, %v460
    %463 = vrot.lane.b32.xlu0 %v461, 96
    %v464 = vpop.permute.xlu0 %463
    %vm466 = vcmask 261120
    %v467 = vsel %vm466, %v464, 0.0
    %v468 = vld [vmem:[#allocation9] sm:$0xff]
    %v469 = vld [vmem:[#allocation9 + $0x8] sm:$0xff]
    %v470 = vld [vmem:[#allocation9 + $0x10] sm:$0xff]
    %v471 = vld [vmem:[#allocation9 + $0x18] sm:$0xff]
    %v472 = vld [vmem:[#allocation9 + $0x20] sm:$0xff]
    %v473 = vld [vmem:[#allocation9 + $0x28] sm:$0xff]
    %v474 = vld [vmem:[#allocation9 + $0x30] sm:$0xff]
    %v475 = vld [vmem:[#allocation9 + $0x38] sm:$0xff]
    %v477 = vcombine.high %v467, %v467
    %v479 = vunpack.c.l.s4 1966171168
    %v480 = vunpack.c.0.s8 %v479
    %v481 = vlaneseq
    %v482 = vshrl.u32 %v481, 7
    %v483 = vsub.s32 %v480, %v482
    %v484 = vrot.slane %v467, %v483
    %v486 = vunpack.c.l.s4 1966171168
    %v487 = vunpack.c.0.s8 %v486
    %v488 = vlaneseq
    %v489 = vshrl.u32 %v488, 7
    %v490 = vsub.s32 %v487, %v489
    %v491 = vrot.slane %v477, %v490
    %v492 = vcombine.high %v484, %v484
    %v493 = vcombine.high %v491, %v491
    %v495 = vunpack.c.l.s4 1966171168
    %v496 = vunpack.c.0.s8 %v495
    %v497 = vlaneseq
    %v498 = vshrl.u32 %v497, 7
    %v499 = vsub.s32 %v496, %v498
    %v500 = vrot.slane %v484, %v499
    %v502 = vunpack.c.l.s4 1966171168
    %v503 = vunpack.c.0.s8 %v502
    %v504 = vlaneseq
    %v505 = vshrl.u32 %v504, 7
    %v506 = vsub.s32 %v503, %v505
    %v507 = vrot.slane %v491, %v506
    %v509 = vunpack.c.l.s4 1966171168
    %v510 = vunpack.c.0.s8 %v509
    %v511 = vlaneseq
    %v512 = vshrl.u32 %v511, 7
    %v513 = vsub.s32 %v510, %v512
    %v514 = vrot.slane %v492, %v513
    %v516 = vunpack.c.l.s4 1966171168
    %v517 = vunpack.c.0.s8 %v516
    %v518 = vlaneseq
    %v519 = vshrl.u32 %v518, 7
    %v520 = vsub.s32 %v517, %v519
    %v521 = vrot.slane %v493, %v520
    %v522 = vcombine.high %v500, %v500
    %v523 = vcombine.high %v507, %v507
    %v524 = vcombine.high %v514, %v514
    %v525 = vcombine.high %v521, %v521
    %v526 = vlaneseq
    %v527 = vshrl.u32 %v526, 7
    %v528 = vsub.s32 0, %v527
    %v529 = vrot.slane %v500, %v528
    %v530 = vlaneseq
    %v531 = vshrl.u32 %v530, 7
    %v532 = vsub.s32 0, %v531
    %v533 = vrot.slane %v514, %v532
    %v534 = vlaneseq
    %v535 = vshrl.u32 %v534, 7
    %v536 = vsub.s32 0, %v535
    %v537 = vrot.slane %v522, %v536
    %v538 = vlaneseq
    %v539 = vshrl.u32 %v538, 7
    %v540 = vsub.s32 0, %v539
    %v541 = vrot.slane %v524, %v540
    %v542 = vlaneseq
    %v543 = vshrl.u32 %v542, 7
    %v544 = vsub.s32 0, %v543
    %v545 = vrot.slane %v507, %v544
    %v546 = vlaneseq
    %v547 = vshrl.u32 %v546, 7
    %v548 = vsub.s32 0, %v547
    %v549 = vrot.slane %v521, %v548
    %v550 = vlaneseq
    %v551 = vshrl.u32 %v550, 7
    %v552 = vsub.s32 0, %v551
    %v553 = vrot.slane %v523, %v552
    %v554 = vlaneseq
    %v555 = vshrl.u32 %v554, 7
    %v556 = vsub.s32 0, %v555
    %v557 = vrot.slane %v525, %v556
    %v566 = vmul.f32 %v529, %v468
    %v567 = vmul.f32 %v533, %v469
    %v568 = vmul.f32 %v537, %v470
    %v569 = vmul.f32 %v541, %v471
    %v570 = vmul.f32 %v545, %v472
    %v571 = vmul.f32 %v549, %v473
    %v572 = vmul.f32 %v553, %v474
    %v573 = vmul.f32 %v557, %v475
    %574 = vadd.xlane.f32.xlu0 %v566
    %v575 = vpop.xlane.xlu0 %574
    %576 = vadd.xlane.f32.xlu0 %v567
    %v577 = vpop.xlane.xlu0 %576
    %578 = vadd.xlane.f32.xlu0 %v568
    %v579 = vpop.xlane.xlu0 %578
    %580 = vadd.xlane.f32.xlu0 %v569
    %v581 = vpop.xlane.xlu0 %580
    %582 = vadd.xlane.f32.xlu0 %v570
    %v583 = vpop.xlane.xlu0 %582
    %584 = vadd.xlane.f32.xlu0 %v571
    %v585 = vpop.xlane.xlu0 %584
    %586 = vadd.xlane.f32.xlu0 %v572
    %v587 = vpop.xlane.xlu0 %586
    %588 = vadd.xlane.f32.xlu0 %v573
    %v589 = vpop.xlane.xlu0 %588
    %v598 = vlaneseq
    %v599 = vand.u32 %v598, 127
    %v600 = vlaneseq
    %v601 = vshrl.u32 %v600, 7
    %v602 = vsub.s32 %v599, %v601
    %v603 = vrot.slane %v575, %v602
    %v604 = vlaneseq
    %v605 = vshrl.u32 %v604, 7
    %v606 = vsub.s32 %v599, %v605
    %v607 = vrot.slane %v577, %v606
    %v608 = vlaneseq
    %v609 = vshrl.u32 %v608, 7
    %v610 = vsub.s32 %v599, %v609
    %v611 = vrot.slane %v579, %v610
    %v612 = vlaneseq
    %v613 = vshrl.u32 %v612, 7
    %v614 = vsub.s32 %v599, %v613
    %v615 = vrot.slane %v581, %v614
    %v616 = vlaneseq
    %v617 = vshrl.u32 %v616, 7
    %v618 = vsub.s32 %v599, %v617
    %v619 = vrot.slane %v583, %v618
    %v620 = vlaneseq
    %v621 = vshrl.u32 %v620, 7
    %v622 = vsub.s32 %v599, %v621
    %v623 = vrot.slane %v585, %v622
    %v624 = vlaneseq
    %v625 = vshrl.u32 %v624, 7
    %v626 = vsub.s32 %v599, %v625
    %v627 = vrot.slane %v587, %v626
    %v628 = vlaneseq
    %v629 = vshrl.u32 %v628, 7
    %v630 = vsub.s32 %v599, %v629
    %v631 = vrot.slane %v589, %v630
    %vm632 = vcmask 1041409
    %v633 = vsel %vm632, %v607, %v603
    %vm634 = vcmask 1042434
    %v635 = vsel %vm634, %v611, %v633
    %vm636 = vcmask 1043459
    %v637 = vsel %vm636, %v615, %v635
    %vm638 = vcmask 1044484
    %v639 = vsel %vm638, %v619, %v637
    %vm640 = vcmask 1045509
    %v641 = vsel %vm640, %v623, %v639
    %vm642 = vcmask 1046534
    %v643 = vsel %vm642, %v627, %v641
    %vm644 = vcmask 1047559
    %v645 = vsel %vm644, %v631, %v643
    %vm647 = vcmask 64512
    %v648 = vsel %vm647, %v645, -inf
    %649 = vmax.xlane.f32.xlu0 %v648
    %v650 = vpop.xlane.xlu0 %649
    %v652 = vlaneseq
    %v653 = vshrl.u32 %v652, 7
    %v654 = vsub.s32 0, %v653
    %v655 = vrot.slane %v650, %v654
    %v656 = vlaneseq
    %v657 = vshrl.u32 %v656, 7
    %v658 = vsub.s32 1, %v657
    %v659 = vrot.slane %v650, %v658
    %v660 = vlaneseq
    %v661 = vshrl.u32 %v660, 7
    %v662 = vsub.s32 2, %v661
    %v663 = vrot.slane %v650, %v662
    %v664 = vlaneseq
    %v665 = vshrl.u32 %v664, 7
    %v666 = vsub.s32 3, %v665
    %v667 = vrot.slane %v650, %v666
    %v668 = vlaneseq
    %v669 = vshrl.u32 %v668, 7
    %v670 = vsub.s32 4, %v669
    %v671 = vrot.slane %v650, %v670
    %v672 = vlaneseq
    %v673 = vshrl.u32 %v672, 7
    %v674 = vsub.s32 5, %v673
    %v675 = vrot.slane %v650, %v674
    %v676 = vlaneseq
    %v677 = vshrl.u32 %v676, 7
    %v678 = vsub.s32 6, %v677
    %v679 = vrot.slane %v650, %v678
    %v680 = vlaneseq
    %v681 = vshrl.u32 %v680, 7
    %v682 = vsub.s32 7, %v681
    %v683 = vrot.slane %v650, %v682
    %v692 = vsub.f32 %v575, %v655
    %v693 = vsub.f32 %v577, %v659
    %v694 = vsub.f32 %v579, %v663
    %v695 = vsub.f32 %v581, %v667
    %v696 = vsub.f32 %v583, %v671
    %v697 = vsub.f32 %v585, %v675
    %v698 = vsub.f32 %v587, %v679
    %v699 = vsub.f32 %v589, %v683
    %v700 = vmul.f32 %v692, 1.442695
    %v701 = vpow.pop %v700
    %v702 = vmul.f32 %v693, 1.442695
    %v703 = vpow.pop %v702
    %v704 = vmul.f32 %v694, 1.442695
    %v705 = vpow.pop %v704
    %v706 = vmul.f32 %v695, 1.442695
    %v707 = vpow.pop %v706
    %v708 = vmul.f32 %v696, 1.442695
    %v709 = vpow.pop %v708
    %v710 = vmul.f32 %v697, 1.442695
    %v711 = vpow.pop %v710
    %v712 = vmul.f32 %v698, 1.442695
    %v713 = vpow.pop %v712
    %v714 = vmul.f32 %v699, 1.442695
    %v715 = vpow.pop %v714
    %724 = vset.pattern.permute.xlu0 0
    %725 = vperm.xlu0 %724, %v701
    %v726 = vpop.permute.xlu0 %725
    %727 = vset.pattern.permute.xlu0 0
    %728 = vperm.xlu0 %727, %v703
    %v729 = vpop.permute.xlu0 %728
    %730 = vset.pattern.permute.xlu0 0
    %731 = vperm.xlu0 %730, %v705
    %v732 = vpop.permute.xlu0 %731
    %733 = vset.pattern.permute.xlu0 0
    %734 = vperm.xlu0 %733, %v707
    %v735 = vpop.permute.xlu0 %734
    %736 = vset.pattern.permute.xlu0 0
    %737 = vperm.xlu0 %736, %v709
    %v738 = vpop.permute.xlu0 %737
    %739 = vset.pattern.permute.xlu0 0
    %740 = vperm.xlu0 %739, %v711
    %v741 = vpop.permute.xlu0 %740
    %742 = vset.pattern.permute.xlu0 0
    %743 = vperm.xlu0 %742, %v713
    %v744 = vpop.permute.xlu0 %743
    %745 = vset.pattern.permute.xlu0 0
    %746 = vperm.xlu0 %745, %v715
    %v747 = vpop.permute.xlu0 %746
    %v748 = vlaneseq
    %v749 = vshrl.u32 %v748, 7
    %v750 = vsub.s32 %v599, %v749
    %v751 = vrot.slane %v726, %v750
    %v752 = vlaneseq
    %v753 = vshrl.u32 %v752, 7
    %v754 = vsub.s32 %v599, %v753
    %v755 = vrot.slane %v729, %v754
    %v756 = vlaneseq
    %v757 = vshrl.u32 %v756, 7
    %v758 = vsub.s32 %v599, %v757
    %v759 = vrot.slane %v732, %v758
    %v760 = vlaneseq
    %v761 = vshrl.u32 %v760, 7
    %v762 = vsub.s32 %v599, %v761
    %v763 = vrot.slane %v735, %v762
    %v764 = vlaneseq
    %v765 = vshrl.u32 %v764, 7
    %v766 = vsub.s32 %v599, %v765
    %v767 = vrot.slane %v738, %v766
    %v768 = vlaneseq
    %v769 = vshrl.u32 %v768, 7
    %v770 = vsub.s32 %v599, %v769
    %v771 = vrot.slane %v741, %v770
    %v772 = vlaneseq
    %v773 = vshrl.u32 %v772, 7
    %v774 = vsub.s32 %v599, %v773
    %v775 = vrot.slane %v744, %v774
    %v776 = vlaneseq
    %v777 = vshrl.u32 %v776, 7
    %v778 = vsub.s32 %v599, %v777
    %v779 = vrot.slane %v747, %v778
    %v780 = vsel %vm632, %v755, %v751
    %v781 = vsel %vm634, %v759, %v780
    %v782 = vsel %vm636, %v763, %v781
    %v783 = vsel %vm638, %v767, %v782
    %v784 = vsel %vm640, %v771, %v783
    %v785 = vsel %vm642, %v775, %v784
    %v786 = vsel %vm644, %v779, %v785
    %v788 = vsel %vm647, %v786, 0.0
    %789 = vadd.xlane.f32.xlu0 %v788
    %v790 = vpop.xlane.xlu0 %789
    %v791 = vrcp.pop %v790
    %v792 = vmul.f32 %v790, %v791
    %v793 = vsub.f32 2.0, %v792
    %v794 = vmul.f32 %v791, %v793
    %v796 = vlaneseq
    %v797 = vshrl.u32 %v796, 7
    %v798 = vsub.s32 0, %v797
    %v799 = vrot.slane %v794, %v798
    %v800 = vlaneseq
    %v801 = vshrl.u32 %v800, 7
    %v802 = vsub.s32 1, %v801
    %v803 = vrot.slane %v794, %v802
    %v804 = vlaneseq
    %v805 = vshrl.u32 %v804, 7
    %v806 = vsub.s32 2, %v805
    %v807 = vrot.slane %v794, %v806
    %v808 = vlaneseq
    %v809 = vshrl.u32 %v808, 7
    %v810 = vsub.s32 3, %v809
    %v811 = vrot.slane %v794, %v810
    %v812 = vlaneseq
    %v813 = vshrl.u32 %v812, 7
    %v814 = vsub.s32 4, %v813
    %v815 = vrot.slane %v794, %v814
    %v816 = vlaneseq
    %v817 = vshrl.u32 %v816, 7
    %v818 = vsub.s32 5, %v817
    %v819 = vrot.slane %v794, %v818
    %v820 = vlaneseq
    %v821 = vshrl.u32 %v820, 7
    %v822 = vsub.s32 6, %v821
    %v823 = vrot.slane %v794, %v822
    %v824 = vlaneseq
    %v825 = vshrl.u32 %v824, 7
    %v826 = vsub.s32 7, %v825
    %v827 = vrot.slane %v794, %v826
    %v836 = vmul.f32 %v701, %v799
    %v837 = vmul.f32 %v703, %v803
    %v838 = vmul.f32 %v705, %v807
    %v839 = vmul.f32 %v707, %v811
    %v840 = vmul.f32 %v709, %v815
    %v841 = vmul.f32 %v711, %v819
    %v842 = vmul.f32 %v713, %v823
    %v843 = vmul.f32 %v715, %v827
    %845 = vset.pattern.permute.xlu0 0
    %846 = vperm.xlu0 %845, %v836
    %v847 = vpop.permute.xlu0 %846
    %850 = vset.pattern.permute.xlu0 0
    %851 = vperm.xlu0 %850, %v837
    %v852 = vpop.permute.xlu0 %851
    %855 = vset.pattern.permute.xlu0 0
    %856 = vperm.xlu0 %855, %v838
    %v857 = vpop.permute.xlu0 %856
    %860 = vset.pattern.permute.xlu0 0
    %861 = vperm.xlu0 %860, %v839
    %v862 = vpop.permute.xlu0 %861
    %865 = vset.pattern.permute.xlu0 0
    %866 = vperm.xlu0 %865, %v840
    %v867 = vpop.permute.xlu0 %866
    %870 = vset.pattern.permute.xlu0 0
    %871 = vperm.xlu0 %870, %v841
    %v872 = vpop.permute.xlu0 %871
    %875 = vset.pattern.permute.xlu0 0
    %876 = vperm.xlu0 %875, %v842
    %v877 = vpop.permute.xlu0 %876
    %880 = vset.pattern.permute.xlu0 0
    %881 = vperm.xlu0 %880, %v843
    %v882 = vpop.permute.xlu0 %881
    %v884 = vmul.f32 %v847, %v468
    %v885 = vmul.f32 %v852, %v469
    %v886 = vmul.f32 %v857, %v470
    %v887 = vmul.f32 %v862, %v471
    %v888 = vmul.f32 %v867, %v472
    %v889 = vmul.f32 %v872, %v473
    %v890 = vmul.f32 %v877, %v474
    %v891 = vmul.f32 %v882, %v475
    %v892 = vrot.slane %v884, 4
    %v893 = vadd.f32 %v884, %v892
    %v894 = vrot.slane %v893, 2
    %v895 = vadd.f32 %v893, %v894
    %v896 = vrot.slane %v895, 1
    %v897 = vadd.f32 %v895, %v896
    %v898 = vrot.slane %v885, 4
    %v899 = vadd.f32 %v885, %v898
    %v900 = vrot.slane %v899, 2
    %v901 = vadd.f32 %v899, %v900
    %v902 = vrot.slane %v901, 1
    %v903 = vadd.f32 %v901, %v902
    %v904 = vrot.slane %v886, 4
    %v905 = vadd.f32 %v886, %v904
    %v906 = vrot.slane %v905, 2
    %v907 = vadd.f32 %v905, %v906
    %v908 = vrot.slane %v907, 1
    %v909 = vadd.f32 %v907, %v908
    %v910 = vrot.slane %v887, 4
    %v911 = vadd.f32 %v887, %v910
    %v912 = vrot.slane %v911, 2
    %v913 = vadd.f32 %v911, %v912
    %v914 = vrot.slane %v913, 1
    %v915 = vadd.f32 %v913, %v914
    %v916 = vrot.slane %v888, 4
    %v917 = vadd.f32 %v888, %v916
    %v918 = vrot.slane %v917, 2
    %v919 = vadd.f32 %v917, %v918
    %v920 = vrot.slane %v919, 1
    %v921 = vadd.f32 %v919, %v920
    %v922 = vrot.slane %v889, 4
    %v923 = vadd.f32 %v889, %v922
    %v924 = vrot.slane %v923, 2
    %v925 = vadd.f32 %v923, %v924
    %v926 = vrot.slane %v925, 1
    %v927 = vadd.f32 %v925, %v926
    %v928 = vrot.slane %v890, 4
    %v929 = vadd.f32 %v890, %v928
    %v930 = vrot.slane %v929, 2
    %v931 = vadd.f32 %v929, %v930
    %v932 = vrot.slane %v931, 1
    %v933 = vadd.f32 %v931, %v932
    %v934 = vrot.slane %v891, 4
    %v935 = vadd.f32 %v891, %v934
    %v936 = vrot.slane %v935, 2
    %v937 = vadd.f32 %v935, %v936
    %v938 = vrot.slane %v937, 1
    %v939 = vadd.f32 %v937, %v938
    %v940 = vpack.c.bf16 %v467, %v467
    %v941 = vld [vmem:[#allocation13] sm:$0xf]
    %v942 = vld [vmem:[#allocation13 + $0x4] sm:$0xf]
    %v943 = vld [vmem:[#allocation13 + $0x8] sm:$0xf]
    %v944 = vld [vmem:[#allocation13 + $0xc] sm:$0xf]
    %v945 = vld [vmem:[#allocation13 + $0x10] sm:$0xf]
    %v946 = vld [vmem:[#allocation13 + $0x14] sm:$0xf]
    %v947 = vld [vmem:[#allocation13 + $0x18] sm:$0xf]
    %v948 = vld [vmem:[#allocation13 + $0x1c] sm:$0xf]
    %v949 = vld [vmem:[#allocation13 + $0x20] sm:$0xf]
    %v950 = vld [vmem:[#allocation13 + $0x24] sm:$0xf]
    %v951 = vld [vmem:[#allocation13 + $0x28] sm:$0xf]
    %v952 = vld [vmem:[#allocation13 + $0x2c] sm:$0xf]
    %v953 = vld [vmem:[#allocation13 + $0x30] sm:$0xf]
    %v954 = vld [vmem:[#allocation13 + $0x34] sm:$0xf]
    %v955 = vld [vmem:[#allocation13 + $0x38] sm:$0xf]
    %v956 = vld [vmem:[#allocation13 + $0x3c] sm:$0xf]
    %v957 = vpack.c.bf16 %v897, %v897
    %v958 = vpack.c.bf16 %v903, %v903
    %v959 = vpack.c.bf16 %v909, %v909
    %v960 = vpack.c.bf16 %v915, %v915
    %v961 = vpack.c.bf16 %v921, %v921
    %v962 = vpack.c.bf16 %v927, %v927
    %v963 = vpack.c.bf16 %v933, %v933
    %v964 = vpack.c.bf16 %v939, %v939
    %v965 = vld [vmem:[#allocation15] sm:$0xf]
    %v966 = vld [vmem:[#allocation15 + $0x4] sm:$0xf]
    %v967 = vld [vmem:[#allocation15 + $0x8] sm:$0xf]
    %v968 = vld [vmem:[#allocation15 + $0xc] sm:$0xf]
    %v969 = vld [vmem:[#allocation15 + $0x10] sm:$0xf]
    %v970 = vld [vmem:[#allocation15 + $0x14] sm:$0xf]
    %v971 = vld [vmem:[#allocation15 + $0x18] sm:$0xf]
    %v972 = vld [vmem:[#allocation15 + $0x1c] sm:$0xf]
    %v973 = vld [vmem:[#allocation15 + $0x20] sm:$0xf]
    %v974 = vld [vmem:[#allocation15 + $0x24] sm:$0xf]
    %v975 = vld [vmem:[#allocation15 + $0x28] sm:$0xf]
    %v976 = vld [vmem:[#allocation15 + $0x2c] sm:$0xf]
    %v977 = vld [vmem:[#allocation15 + $0x30] sm:$0xf]
    %v978 = vld [vmem:[#allocation15 + $0x34] sm:$0xf]
    %v979 = vld [vmem:[#allocation15 + $0x38] sm:$0xf]
    %v980 = vld [vmem:[#allocation15 + $0x3c] sm:$0xf]
    %v989 = vunpack.c.l.b16 %v957
    %v990 = vunpack.c.l.b16 %v958
    %v991 = vunpack.c.l.b16 %v959
    %v992 = vunpack.c.l.b16 %v960
    %v993 = vunpack.c.l.b16 %v961
    %v994 = vunpack.c.l.b16 %v962
    %v995 = vunpack.c.l.b16 %v963
    %v996 = vunpack.c.l.b16 %v964
    %v997 = vsel %vm632, %v990, %v989
    %v998 = vsel %vm634, %v991, %v997
    %v999 = vsel %vm636, %v992, %v998
    %v1000 = vsel %vm638, %v993, %v999
    %v1001 = vsel %vm640, %v994, %v1000
    %v1002 = vsel %vm642, %v995, %v1001
    %v1003 = vsel %vm644, %v996, %v1002
    %v1004 = vpack.c.b16 %v1003, %v1003
    %v1022 = vunpack.c.l.b16 %v965
    %v1023 = vunpack.c.l.b16 %v966
    %v1024 = vunpack.c.l.b16 %v967
    %v1025 = vunpack.c.l.b16 %v968
    %v1026 = vunpack.c.l.b16 %v969
    %v1027 = vunpack.c.l.b16 %v970
    %v1028 = vunpack.c.l.b16 %v971
    %v1029 = vunpack.c.l.b16 %v972
    %v1030 = vunpack.c.l.b16 %v973
    %v1031 = vunpack.c.l.b16 %v974
    %v1032 = vunpack.c.l.b16 %v975
    %v1033 = vunpack.c.l.b16 %v976
    %v1034 = vunpack.c.l.b16 %v977
    %v1035 = vunpack.c.l.b16 %v978
    %v1036 = vunpack.c.l.b16 %v979
    %v1037 = vunpack.c.l.b16 %v980
    %v1038 = vpack.c.b16 %v1023, %v1022
    %v1039 = vpack.c.b16 %v1025, %v1024
    %v1040 = vpack.c.b16 %v1027, %v1026
    %v1041 = vpack.c.b16 %v1029, %v1028
    %v1042 = vpack.c.b16 %v1031, %v1030
    %v1043 = vpack.c.b16 %v1033, %v1032
    %v1044 = vpack.c.b16 %v1035, %v1034
    %v1045 = vpack.c.b16 %v1037, %v1036
    %1054 = vmatprep.subr.bf16.mxu0 0
    %1055 = vmatpush1.bf16.msra.mxu0 %v1038
    %1056 = vmatprep.subr.bf16.mxu0 0
    %1057 = vmatpush1.bf16.msra.mxu0 %v1039
    %1058 = vmatprep.subr.bf16.mxu0 0
    %1059 = vmatpush1.bf16.msra.mxu0 %v1040
    %1060 = vmatprep.subr.bf16.mxu0 0
    %1061 = vmatpush1.bf16.msra.mxu0 %v1041
    %1062 = vmatprep.subr.bf16.mxu0 0
    %1063 = vmatpush1.bf16.msra.mxu0 %v1042
    %1064 = vmatprep.subr.bf16.mxu0 0
    %1065 = vmatpush1.bf16.msra.mxu0 %v1043
    %1066 = vmatprep.subr.bf16.mxu0 0
    %1067 = vmatpush1.bf16.msra.mxu0 %v1044
    %1068 = vmatprep.subr.bf16.mxu0 0
    %1069 = vmatpush1.bf16.msra.mxu0 %v1045
    %1070 = vmatprep.subr.bf16.mxu0 0
    %1071 = vmatpush1.bf16.msra.mxu0 0
    %1072 = vmatprep.subr.bf16.mxu0 0
    %1073 = vmatpush1.bf16.msra.mxu0 0
    %1074 = vmatprep.subr.bf16.mxu0 0
    %1075 = vmatpush1.bf16.msra.mxu0 0
    %1076 = vmatprep.subr.bf16.mxu0 0
    %1077 = vmatpush1.bf16.msra.mxu0 0
    %1078 = vmatprep.subr.bf16.mxu0 0
    %1079 = vmatpush1.bf16.msra.mxu0 0
    %1080 = vmatprep.subr.bf16.mxu0 0
    %1081 = vmatpush1.bf16.msra.mxu0 0
    %1082 = vmatprep.subr.bf16.mxu0 0
    %1083 = vmatpush1.bf16.msra.mxu0 0
    %1084 = vmatprep.subr.bf16.mxu0 0
    %1085 = vmatpush1.bf16.msra.mxu0 0
    %1086 = vmatprep.mubr.bf16.mxu0 0
    %1087 = vmatmul.mubr.bf16.gmra.mrb[0].mxu0 %v1004
    %v1088 = vpop.f32.mrb[0].mxu0
    %v1089 = vadd.f32 0.0, %v1088
    %v1090 = vpop.f32.mrb[0].mxu0
    %v1091 = vpop.f32.mrb[0].mxu0
    %v1092 = vpop.f32.mrb[0].mxu0
    %1093 = vdwg.mxu0
    %v1110 = vunpack.c.l.b16 %v941
    %v1111 = vunpack.c.l.b16 %v942
    %v1112 = vunpack.c.l.b16 %v943
    %v1113 = vunpack.c.l.b16 %v944
    %v1114 = vunpack.c.l.b16 %v945
    %v1115 = vunpack.c.l.b16 %v946
    %v1116 = vunpack.c.l.b16 %v947
    %v1117 = vunpack.c.l.b16 %v948
    %v1118 = vunpack.c.l.b16 %v949
    %v1119 = vunpack.c.l.b16 %v950
    %v1120 = vunpack.c.l.b16 %v951
    %v1121 = vunpack.c.l.b16 %v952
    %v1122 = vunpack.c.l.b16 %v953
    %v1123 = vunpack.c.l.b16 %v954
    %v1124 = vunpack.c.l.b16 %v955
    %v1125 = vunpack.c.l.b16 %v956
    %v1126 = vpack.c.b16 %v1111, %v1110
    %v1127 = vpack.c.b16 %v1113, %v1112
    %v1128 = vpack.c.b16 %v1115, %v1114
    %v1129 = vpack.c.b16 %v1117, %v1116
    %v1130 = vpack.c.b16 %v1119, %v1118
    %v1131 = vpack.c.b16 %v1121, %v1120
    %v1132 = vpack.c.b16 %v1123, %v1122
    %v1133 = vpack.c.b16 %v1125, %v1124
    %1142 = vmatprep.subr.bf16.mxu0 0
    %1143 = vmatpush1.bf16.msra.mxu0 %v1126
    %1144 = vmatprep.subr.bf16.mxu0 0
    %1145 = vmatpush1.bf16.msra.mxu0 %v1127
    %1146 = vmatprep.subr.bf16.mxu0 0
    %1147 = vmatpush1.bf16.msra.mxu0 %v1128
    %1148 = vmatprep.subr.bf16.mxu0 0
    %1149 = vmatpush1.bf16.msra.mxu0 %v1129
    %1150 = vmatprep.subr.bf16.mxu0 0
    %1151 = vmatpush1.bf16.msra.mxu0 %v1130
    %1152 = vmatprep.subr.bf16.mxu0 0
    %1153 = vmatpush1.bf16.msra.mxu0 %v1131
    %1154 = vmatprep.subr.bf16.mxu0 0
    %1155 = vmatpush1.bf16.msra.mxu0 %v1132
    %1156 = vmatprep.subr.bf16.mxu0 0
    %1157 = vmatpush1.bf16.msra.mxu0 %v1133
    %1158 = vmatprep.subr.bf16.mxu0 0
    %1159 = vmatpush1.bf16.msra.mxu0 0
    %1160 = vmatprep.subr.bf16.mxu0 0
    %1161 = vmatpush1.bf16.msra.mxu0 0
    %1162 = vmatprep.subr.bf16.mxu0 0
    %1163 = vmatpush1.bf16.msra.mxu0 0
    %1164 = vmatprep.subr.bf16.mxu0 0
    %1165 = vmatpush1.bf16.msra.mxu0 0
    %1166 = vmatprep.subr.bf16.mxu0 0
    %1167 = vmatpush1.bf16.msra.mxu0 0
    %1168 = vmatprep.subr.bf16.mxu0 0
    %1169 = vmatpush1.bf16.msra.mxu0 0
    %1170 = vmatprep.subr.bf16.mxu0 0
    %1171 = vmatpush1.bf16.msra.mxu0 0
    %1172 = vmatprep.subr.bf16.mxu0 0
    %1173 = vmatpush1.bf16.msra.mxu0 0
    %1174 = vmatprep.mubr.bf16.mxu0 0
    %1175 = vmatmul.mubr.bf16.gmra.mrb[0].mxu0 %v940
    %v1176 = vpop.f32.mrb[0].mxu0
    %v1177 = vadd.f32 %v1089, %v1176
    %v1178 = vpop.f32.mrb[0].mxu0
    %v1179 = vpop.f32.mrb[0].mxu0
    %v1180 = vpop.f32.mrb[0].mxu0
    %1181 = vdwg.mxu0
    %v1182 = vld [vmem:[%s9] sm:$0x1]
    %v1184 = vlaneseq
    %v1185 = vshrl.u32 %v1184, 7
    %v1186 = vsub.s32 0, %v1185
    %v1187 = vrot.slane %v1182, %v1186
    %v1189 = vadd.f32 %v1177, %v1187
    %v1190 = vtanh.pop %v1189
    %v1191 = vpack.c.bf16 %v1190, %v1190
    %v1192 = vld [vmem:[#allocation16] sm:$0xf]
    %v1193 = vld [vmem:[#allocation16 + $0x4] sm:$0xf]
    %v1194 = vld [vmem:[#allocation16 + $0x8] sm:$0xf]
    %v1195 = vld [vmem:[#allocation16 + $0xc] sm:$0xf]
    %v1196 = vld [vmem:[#allocation16 + $0x10] sm:$0xf]
    %v1197 = vld [vmem:[#allocation16 + $0x14] sm:$0xf]
    %v1198 = vld [vmem:[#allocation16 + $0x18] sm:$0xf]
    %v1199 = vld [vmem:[#allocation16 + $0x1c] sm:$0xf]
    %v1200 = vld [vmem:[#allocation16 + $0x20] sm:$0xf]
    %v1201 = vld [vmem:[#allocation16 + $0x24] sm:$0xf]
    %v1202 = vld [vmem:[#allocation16 + $0x28] sm:$0xf]
    %v1203 = vld [vmem:[#allocation16 + $0x2c] sm:$0xf]
    %v1204 = vld [vmem:[#allocation16 + $0x30] sm:$0xf]
    %v1205 = vld [vmem:[#allocation16 + $0x34] sm:$0xf]
    %v1206 = vld [vmem:[#allocation16 + $0x38] sm:$0xf]
    %v1207 = vld [vmem:[#allocation16 + $0x3c] sm:$0xf]
    %v1208 = vld [vmem:[%s11] sm:$0x1]
    %v1210 = vlaneseq
    %v1211 = vshrl.u32 %v1210, 7
    %v1212 = vsub.s32 0, %v1211
    %v1213 = vrot.slane %v1208, %v1212
    %v1231 = vunpack.c.l.b16 %v1192
    %v1232 = vunpack.c.l.b16 %v1193
    %v1233 = vunpack.c.l.b16 %v1194
    %v1234 = vunpack.c.l.b16 %v1195
    %v1235 = vunpack.c.l.b16 %v1196
    %v1236 = vunpack.c.l.b16 %v1197
    %v1237 = vunpack.c.l.b16 %v1198
    %v1238 = vunpack.c.l.b16 %v1199
    %v1239 = vunpack.c.l.b16 %v1200
    %v1240 = vunpack.c.l.b16 %v1201
    %v1241 = vunpack.c.l.b16 %v1202
    %v1242 = vunpack.c.l.b16 %v1203
    %v1243 = vunpack.c.l.b16 %v1204
    %v1244 = vunpack.c.l.b16 %v1205
    %v1245 = vunpack.c.l.b16 %v1206
    %v1246 = vunpack.c.l.b16 %v1207
    %v1247 = vpack.c.b16 %v1232, %v1231
    %v1248 = vpack.c.b16 %v1234, %v1233
    %v1249 = vpack.c.b16 %v1236, %v1235
    %v1250 = vpack.c.b16 %v1238, %v1237
    %v1251 = vpack.c.b16 %v1240, %v1239
    %v1252 = vpack.c.b16 %v1242, %v1241
    %v1253 = vpack.c.b16 %v1244, %v1243
    %v1254 = vpack.c.b16 %v1246, %v1245
    %1263 = vmatprep.subr.bf16.mxu0 0
    %1264 = vmatpush1.bf16.msra.mxu0 %v1247
    %1265 = vmatprep.subr.bf16.mxu0 0
    %1266 = vmatpush1.bf16.msra.mxu0 %v1248
    %1267 = vmatprep.subr.bf16.mxu0 0
    %1268 = vmatpush1.bf16.msra.mxu0 %v1249
    %1269 = vmatprep.subr.bf16.mxu0 0
    %1270 = vmatpush1.bf16.msra.mxu0 %v1250
    %1271 = vmatprep.subr.bf16.mxu0 0
    %1272 = vmatpush1.bf16.msra.mxu0 %v1251
    %1273 = vmatprep.subr.bf16.mxu0 0
    %1274 = vmatpush1.bf16.msra.mxu0 %v1252
    %1275 = vmatprep.subr.bf16.mxu0 0
    %1276 = vmatpush1.bf16.msra.mxu0 %v1253
    %1277 = vmatprep.subr.bf16.mxu0 0
    %1278 = vmatpush1.bf16.msra.mxu0 %v1254
    %1279 = vmatprep.subr.bf16.mxu0 0
    %1280 = vmatpush1.bf16.msra.mxu0 0
    %1281 = vmatprep.subr.bf16.mxu0 0
    %1282 = vmatpush1.bf16.msra.mxu0 0
    %1283 = vmatprep.subr.bf16.mxu0 0
    %1284 = vmatpush1.bf16.msra.mxu0 0
    %1285 = vmatprep.subr.bf16.mxu0 0
    %1286 = vmatpush1.bf16.msra.mxu0 0
    %1287 = vmatprep.subr.bf16.mxu0 0
    %1288 = vmatpush1.bf16.msra.mxu0 0
    %1289 = vmatprep.subr.bf16.mxu0 0
    %1290 = vmatpush1.bf16.msra.mxu0 0
    %1291 = vmatprep.subr.bf16.mxu0 0
    %1292 = vmatpush1.bf16.msra.mxu0 0
    %1293 = vmatprep.subr.bf16.mxu0 0
    %1294 = vmatpush1.bf16.msra.mxu0 0
    %1295 = vmatprep.mubr.bf16.mxu0 0
    %1296 = vmatmul.mubr.bf16.gmra.mrb[0].mxu0 %v1191
    %v1297 = vpop.f32.mrb[0].mxu0
    %v1298 = vadd.f32 %v1213, %v1297
    %v1299 = vpop.f32.mrb[0].mxu0
    %v1300 = vpop.f32.mrb[0].mxu0
    %v1301 = vpop.f32.mrb[0].mxu0
    %1302 = vdwg.mxu0
    %1303 = vmax.xlane.f32.xlu0 %v1298
    %v1304 = vpop.xlane.xlu0 %1303
    %v1305 = vsub.f32 %v1298, %v1304
    %v1306 = vmul.f32 %v1305, 1.442695
    %v1307 = vpow.pop %v1306
    %1308 = vadd.xlane.f32.xlu0 %v1307
    %v1309 = vpop.xlane.xlu0 %1308
    %v1310 = vrcp.pop %v1309
    %v1311 = vmul.f32 %v1309, %v1310
    %v1312 = vsub.f32 2.0, %v1311
    %v1313 = vmul.f32 %v1310, %v1312
    %v1314 = vmul.f32 %v1307, %v1313
    %1315 = vst [vmem:[#allocation18] sm:$0xff] %v1314
    %1316 = vst [vmem:[#allocation19] sm:$0xff] %v467
    // Predicated region
    $region78: #{tpu_custom_call.1} parent=1 // pred_check
      _
    $region79: #{tpu_custom_call.1} parent=1 // pred_check_branch
      %1318 = sbr.rel (0) target = $region81
    $region80: #{tpu_custom_call.1} parent=1 // pred_region
      %s1320 = ssub.s32 128, 128
      %1321 = vsyncadd [#allocation6], %s1320
      %s1323 = sshll.u32 [#allocation18], 4
      %s1324 = int_to_ptr.vmem [resolvable:$true] %s1323
      %1326 = dma.vmem_to_hbm [thread:$0]  %s1324, 128, %s12, [#allocation6]
    $region81: #{tpu_custom_call.1} parent=1 // pred_fallthru
      _
    // Predicated region
    $region82: #{tpu_custom_call.1} parent=1 // pred_check
      _
    $region83: #{tpu_custom_call.1} parent=1 // pred_check_branch
      %1328 = sbr.rel (0) target = $region85
    $region84: #{tpu_custom_call.1} parent=1 // pred_region
      %s1330 = ssub.s32 128, 128
      %1331 = vsyncadd [#allocation20], %s1330
      %s1333 = sshll.u32 [#allocation19], 4
      %s1334 = int_to_ptr.vmem [resolvable:$true] %s1333
      %1336 = dma.vmem_to_hbm [thread:$0]  %s1334, 128, %s13, [#allocation20]
    $region85: #{tpu_custom_call.1} parent=1 // pred_fallthru
      _
    // Predicated region
    $region86: #{tpu_custom_call.1} parent=1 // pred_check
      _
    $region87: #{tpu_custom_call.1} parent=1 // pred_check_branch
      %1338 = sbr.rel (0) target = $region89
    $region88: #{tpu_custom_call.1} parent=1 // pred_region
      %1339 = dma.done [#allocation6], 128
    $region89: #{tpu_custom_call.1} parent=1 // pred_fallthru
      _
    // Predicated region
    $region90: #{tpu_custom_call.1} parent=1 // pred_check
      _
    $region91: #{tpu_custom_call.1} parent=1 // pred_check_branch
      %1341 = sbr.rel (0) target = $region93
    $region92: #{tpu_custom_call.1} parent=1 // pred_region
      %1342 = dma.done [#allocation20], 128
    $region93: #{tpu_custom_call.1} parent=1 // pred_fallthru
      _
    %1343 = vsyncpa [#allocation5], 1
    %1344 = vsyncpa [#allocation8], 1
    %1345 = vsyncpa [#allocation11], 1
    %1346 = vsyncpa [#allocation14], 1
    %1347 = vsyncpa [#allocation17], 1
    %1348 = vsyncpa [#allocation6], 1
    %1349 = vsyncpa [#allocation20], 1

</llo_original>
